<compile_context>
chip_gen: v7x
topology: tpu7x:2x2x1
jax: 0.10.0
libtpu: 0.0.40
codegen_flags: <defaults>
</compile_context>

<pallas_src>
import jax
import jax.numpy as jnp
import numpy as np
from jax import lax
from jax.experimental import pallas as pl
from jax.experimental.pallas import tpu as pltpu

# ---- sizes (small, consistent with the module) ------------------------------
ND = 4       # documents per call (grid axis)
S = 8        # sentences per document (sequence length, batch = 1)
E = 32       # sent_embed_size
H = 16       # nHidden  -> bi-LSTM output = 2H = 32
BUY = 2      # buy_class

# TODO(synk): the SentenceTransformer text encoder itself has no Pallas
# equivalent; its output embeddings are taken as the kernel input.


def hibert_kernel(x_ref,
                  wih_ref, whh_bd_ref, b_ref,
                  wc_t_ref, bc_ref, uw_ref, wp_t_ref, bp_ref,
                  buy_ref, alpha_ref,
                  rec_ref):
    x = x_ref[0]                                                   # (S, E)

    # One lane-dense MXU pass: input->gate preactivations for BOTH directions
    # at every timestep; combined (bias_ih + bias_hh) biases folded in.
    xg = jnp.dot(x, wih_ref[...],
                 preferred_element_type=jnp.float32) + b_ref[...]  # (S, 8H=128)

    whh_bd = whh_bd_ref[...]                                       # (2H, 8H) block-diag

    def cell(pre, c):
        # PyTorch LSTM gate order: i, f, g, o
        i = jax.nn.sigmoid(pre[:, 0 * H:1 * H])
        f = jax.nn.sigmoid(pre[:, 1 * H:2 * H])
        g = jnp.tanh(pre[:, 2 * H:3 * H])
        o = jax.nn.sigmoid(pre[:, 3 * H:4 * H])
        c_new = f * c + i * g
        h_new = o * jnp.tanh(c_new)
        return h_new, c_new

    h_f = jnp.zeros((1, H), jnp.float32)
    c_f = jnp.zeros((1, H), jnp.float32)
    h_b = jnp.zeros((1, H), jnp.float32)
    c_b = jnp.zeros((1, H), jnp.float32)

    # Fused, fully-unrolled bidirectional recurrence: step k advances the
    # forward direction at t = k and the backward direction at t = S-1-k with a
    # single MXU matmul against block-diagonal recurrent weights.  Static k
    # gives static slices and static (unmasked-index) scratch stores.
    for k in range(S):
        tb = S - 1 - k
        h_cat = jnp.concatenate([h_f, h_b], axis=1)                # (1, 2H)
        rg = jnp.dot(h_cat, whh_bd,
                     preferred_element_type=jnp.float32)           # (1, 8H)
        pre_f = xg[k:k + 1, 0:4 * H] + rg[:, 0:4 * H]
        pre_b = xg[tb:tb + 1, 4 * H:8 * H] + rg[:, 4 * H:8 * H]
        h_f, c_f = cell(pre_f, c_f)
        h_b, c_b = cell(pre_b, c_b)
        rec_ref[k:k + 1, 0:H] = h_f
        rec_ref[tb:tb + 1, H:2 * H] = h_b

    recurrent = rec_ref[...]                                       # (S, 2H)

    # ---- attention (VPU multiply + lane reduce; EUP approx reciprocal) ------
    ut = jnp.tanh(jnp.dot(recurrent, wc_t_ref[...],
                          preferred_element_type=jnp.float32) + bc_ref[...])
    scores = jnp.sum(ut * uw_ref[...], axis=1, keepdims=True)      # (S, 1)
    scores = scores - jnp.max(scores, axis=0, keepdims=True)
    e = jnp.exp(scores)
    alphas = e * pl.reciprocal(jnp.sum(e, axis=0, keepdims=True), approx=True)
    alpha_ref[0] = alphas

    # ---- context + classifier ----------------------------------------------
    context = jnp.sum(recurrent * alphas, axis=0, keepdims=True)   # (1, 2H)
    buy_ref[0] = jnp.dot(context, wp_t_ref[...],
                         preferred_element_type=jnp.float32) + bp_ref[...]


def pack_params(params):
    """Host-side layout plumbing: transposes, concats, block-diagonal."""
    (wih_f, whh_f, b_f, wih_b, whh_b, b_b, wc, bc, uw, wp, bp) = params
    wih_cat = jnp.concatenate([wih_f.T, wih_b.T], axis=1)          # (E, 8H)
    whh_bd = jnp.zeros((2 * H, 8 * H), jnp.float32)
    whh_bd = whh_bd.at[0:H, 0:4 * H].set(whh_f.T)                  # fwd block
    whh_bd = whh_bd.at[H:2 * H, 4 * H:8 * H].set(whh_b.T)          # bwd block
    b_cat = jnp.concatenate([b_f, b_b], axis=1)                    # (1, 8H)
    return (wih_cat, whh_bd, b_cat, wc.T, bc, uw.T, wp.T, bp)


def hibert_forward(x_docs, packed):
    nd = x_docs.shape[0]
    vmem_full = pl.BlockSpec(memory_space=pltpu.MemorySpace.VMEM)
    return pl.pallas_call(
        hibert_kernel,
        grid=(nd,),
        out_shape=(jax.ShapeDtypeStruct((nd, 1, BUY), jnp.float32),  # buy logits
                   jax.ShapeDtypeStruct((nd, S, 1), jnp.float32)),   # alphas
        in_specs=[pl.BlockSpec((1, S, E), lambda d: (d, 0, 0))]
                 + [vmem_full] * len(packed),
        out_specs=(pl.BlockSpec((1, 1, BUY), lambda d: (d, 0, 0)),
                   pl.BlockSpec((1, S, 1), lambda d: (d, 0, 0))),
        scratch_shapes=[pltpu.VMEM((S, 2 * H), jnp.float32)],       # recurrent (S, 2H)
        compiler_params=pltpu.CompilerParams(
            dimension_semantics=("parallel",)),
    )(x_docs, *packed)


# ---- pure-JAX reference (same math, PyTorch parameter layout) ----------------
def reference_forward(x, params):
    (wih_f, whh_f, b_f, wih_b, whh_b, b_b, wc, bc, uw, wp, bp) = params

    def run_dir(wih, whh, b, reverse):
        def step(carry, x_t):
            h, c = carry
            gates = x_t[None, :] @ wih.T + h @ whh.T + b
            i, f, g, o = jnp.split(gates, 4, axis=-1)
            c = jax.nn.sigmoid(f) * c + jax.nn.sigmoid(i) * jnp.tanh(g)
            h = jax.nn.sigmoid(o) * jnp.tanh(c)
            return (h, c), h[0]
        init = (jnp.zeros((1, H), jnp.float32), jnp.zeros((1, H), jnp.float32))
        _, hs = lax.scan(step, init, x, reverse=reverse)
        return hs                                                   # (S, H)

    rec = jnp.concatenate(
        [run_dir(wih_f, whh_f, b_f, False),
         run_dir(wih_b, whh_b, b_b, True)], axis=1)                 # (S, 2H)
    ut = jnp.tanh(rec @ wc.T + bc)
    scores = ut @ uw
    alphas = jax.nn.softmax(scores, axis=0)
    context = jnp.sum(rec * alphas, axis=0, keepdims=True)
    buy = context @ wp.T + bp
    return buy, alphas


def make_params(key):
    ks = jax.random.split(key, 11)
    scale = 0.1
    wih_f = scale * jax.random.normal(ks[0], (4 * H, E), jnp.float32)
    whh_f = scale * jax.random.normal(ks[1], (4 * H, H), jnp.float32)
    b_f   = scale * jax.random.normal(ks[2], (1, 4 * H), jnp.float32)   # bias_ih + bias_hh
    wih_b = scale * jax.random.normal(ks[3], (4 * H, E), jnp.float32)
    whh_b = scale * jax.random.normal(ks[4], (4 * H, H), jnp.float32)
    b_b   = scale * jax.random.normal(ks[5], (1, 4 * H), jnp.float32)
    wc    = scale * jax.random.normal(ks[6], (2 * H, 2 * H), jnp.float32)  # hidden2context
    bc    = scale * jax.random.normal(ks[7], (1, 2 * H), jnp.float32)
    uw    = jax.random.normal(ks[8], (2 * H, 1), jnp.float32)             # attention vector
    wp    = scale * jax.random.normal(ks[9], (BUY, 2 * H), jnp.float32)   # buy_predictor_layer
    bp    = scale * jax.random.normal(ks[10], (1, BUY), jnp.float32)
    return (wih_f, whh_f, b_f, wih_b, whh_b, b_b, wc, bc, uw, wp, bp)


if __name__ == "__main__":
    key = jax.random.PRNGKey(0)
    k_x, k_p = jax.random.split(key)
    # ND documents, each with S sentence embeddings of size E.
    x_docs = jax.random.normal(k_x, (ND, S, E), jnp.float32)
    params = make_params(k_p)
    packed = pack_params(params)

    buy, alphas = hibert_forward(x_docs, packed)
    buy = jax.block_until_ready(buy)
    alphas = jax.block_until_ready(alphas)

    buy_ref, alphas_ref = jax.vmap(lambda xd: reference_forward(xd, params))(x_docs)

    # Tolerance accounts for the ~2^-12 relative error of the approx (EUP)
    # reciprocal used in the in-kernel softmax denominator.
    np.testing.assert_allclose(np.asarray(buy), np.asarray(buy_ref),
                               rtol=2e-3, atol=2e-4)
    np.testing.assert_allclose(np.asarray(alphas), np.asarray(alphas_ref),
                               rtol=2e-3, atol=2e-4)
    assert buy.shape == (ND, 1, BUY) and alphas.shape == (ND, S, 1)
    print("KERNEL_OK")
</pallas_src>

<mosaic_0001>
module attributes {stable_mosaic.version = 11 : i64} {
  func.func @hibert_kernel(%arg0: i32, %arg1: memref<1x8x32xf32, #tpu.memory_space<vmem>>, %arg2: memref<32x128xf32, #tpu.memory_space<vmem>>, %arg3: memref<32x128xf32, #tpu.memory_space<vmem>>, %arg4: memref<1x128xf32, #tpu.memory_space<vmem>>, %arg5: memref<32x32xf32, #tpu.memory_space<vmem>>, %arg6: memref<1x32xf32, #tpu.memory_space<vmem>>, %arg7: memref<1x32xf32, #tpu.memory_space<vmem>>, %arg8: memref<32x2xf32, #tpu.memory_space<vmem>>, %arg9: memref<1x2xf32, #tpu.memory_space<vmem>>, %arg10: memref<1x1x2xf32, #tpu.memory_space<vmem>>, %arg11: memref<1x8x1xf32, #tpu.memory_space<vmem>>, %arg12: memref<8x32xf32, #tpu.memory_space<vmem>>) attributes {dimension_semantics = [#tpu.dimension_semantics<parallel>], iteration_bounds = array<i64: 4>, scalar_prefetch = 0 : i64, scratch_operands = 1 : i64, tpu.core_type = #tpu.core_type<tc>, window_params = [{transform_indices = @transform_0, window_bounds = array<i64: 1, 8, 32>}, {pipeline_mode = #tpu.pipeline_mode<synchronous>, transform_indices = @transform_1, window_bounds = array<i64: 32, 128>}, {pipeline_mode = #tpu.pipeline_mode<synchronous>, transform_indices = @transform_2, window_bounds = array<i64: 32, 128>}, {pipeline_mode = #tpu.pipeline_mode<synchronous>, transform_indices = @transform_3, window_bounds = array<i64: 1, 128>}, {pipeline_mode = #tpu.pipeline_mode<synchronous>, transform_indices = @transform_4, window_bounds = array<i64: 32, 32>}, {pipeline_mode = #tpu.pipeline_mode<synchronous>, transform_indices = @transform_5, window_bounds = array<i64: 1, 32>}, {pipeline_mode = #tpu.pipeline_mode<synchronous>, transform_indices = @transform_6, window_bounds = array<i64: 1, 32>}, {pipeline_mode = #tpu.pipeline_mode<synchronous>, transform_indices = @transform_7, window_bounds = array<i64: 32, 2>}, {pipeline_mode = #tpu.pipeline_mode<synchronous>, transform_indices = @transform_8, window_bounds = array<i64: 1, 2>}, {transform_indices = @transform_9, window_bounds = array<i64: 1, 1, 2>}, {transform_indices = @transform_10, window_bounds = array<i64: 1, 8, 1>}]} {
    %c0 = arith.constant 0 : index
    %c0_0 = arith.constant 0 : index
    %c0_1 = arith.constant 0 : index
    %0 = vector.load %arg1[%c0, %c0_0, %c0_1] : memref<1x8x32xf32, #tpu.memory_space<vmem>>, vector<1x8x32xf32>
    %1 = vector.shape_cast %0 : vector<1x8x32xf32> to vector<8x32xf32>
    %c0_2 = arith.constant 0 : index
    %c0_3 = arith.constant 0 : index
    %2 = vector.load %arg2[%c0_2, %c0_3] : memref<32x128xf32, #tpu.memory_space<vmem>>, vector<32x128xf32>
    %cst = arith.constant dense<0.000000e+00> : vector<8x128xf32>
    %3 = tpu.matmul %1, %2, %cst {dimension_numbers = #tpu.dot_dimension_numbers<[1], [0], [0], [1], [0, 0, 1, 1], [], []>} : vector<8x32xf32>, vector<32x128xf32>, vector<8x128xf32> -> vector<8x128xf32>
    %c0_4 = arith.constant 0 : index
    %c0_5 = arith.constant 0 : index
    %4 = vector.load %arg4[%c0_4, %c0_5] : memref<1x128xf32, #tpu.memory_space<vmem>>, vector<1x128xf32>
    %5 = vector.broadcast %4 : vector<1x128xf32> to vector<8x128xf32>
    %6 = arith.addf %3, %5 : vector<8x128xf32>
    %c0_6 = arith.constant 0 : index
    %c0_7 = arith.constant 0 : index
    %7 = vector.load %arg3[%c0_6, %c0_7] : memref<32x128xf32, #tpu.memory_space<vmem>>, vector<32x128xf32>
    %cst_8 = arith.constant 0.000000e+00 : f32
    %8 = vector.broadcast %cst_8 : f32 to vector<1x16xf32>
    %cst_9 = arith.constant 0.000000e+00 : f32
    %9 = vector.broadcast %cst_9 : f32 to vector<1x16xf32>
    %cst_10 = arith.constant 0.000000e+00 : f32
    %10 = vector.broadcast %cst_10 : f32 to vector<1x16xf32>
    %cst_11 = arith.constant 0.000000e+00 : f32
    %11 = vector.broadcast %cst_11 : f32 to vector<1x16xf32>
    %12 = tpu.concatenate %8, %10 in 1 : vector<1x16xf32>, vector<1x16xf32> -> vector<1x32xf32>
    %cst_12 = arith.constant dense<0.000000e+00> : vector<1x128xf32>
    %13 = tpu.matmul %12, %7, %cst_12 {dimension_numbers = #tpu.dot_dimension_numbers<[1], [0], [0], [1], [0, 0, 1, 1], [], []>} : vector<1x32xf32>, vector<32x128xf32>, vector<1x128xf32> -> vector<1x128xf32>
    %14 = vector.extract_strided_slice %6 {offsets = [0, 0], sizes = [1, 64], strides = [1, 1]} : vector<8x128xf32> to vector<1x64xf32>
    %15 = vector.extract_strided_slice %13 {offsets = [0, 0], sizes = [1, 64], strides = [1, 1]} : vector<1x128xf32> to vector<1x64xf32>
    %16 = arith.addf %14, %15 : vector<1x64xf32>
    %17 = vector.extract_strided_slice %6 {offsets = [7, 64], sizes = [1, 64], strides = [1, 1]} : vector<8x128xf32> to vector<1x64xf32>
    %18 = vector.extract_strided_slice %13 {offsets = [0, 64], sizes = [1, 64], strides = [1, 1]} : vector<1x128xf32> to vector<1x64xf32>
    %19 = arith.addf %17, %18 : vector<1x64xf32>
    %20 = vector.extract_strided_slice %16 {offsets = [0, 0], sizes = [1, 16], strides = [1, 1]} : vector<1x64xf32> to vector<1x16xf32>
    %21 = arith.negf %20 : vector<1x16xf32>
    %22 = math.exp %21 : vector<1x16xf32>
    %cst_13 = arith.constant 1.000000e+00 : f32
    %23 = vector.broadcast %cst_13 : f32 to vector<1x16xf32>
    %24 = arith.addf %23, %22 : vector<1x16xf32>
    %25 = arith.divf %23, %24 : vector<1x16xf32>
    %26 = vector.extract_strided_slice %16 {offsets = [0, 16], sizes = [1, 16], strides = [1, 1]} : vector<1x64xf32> to vector<1x16xf32>
    %27 = arith.negf %26 : vector<1x16xf32>
    %28 = math.exp %27 : vector<1x16xf32>
    %cst_14 = arith.constant 1.000000e+00 : f32
    %29 = vector.broadcast %cst_14 : f32 to vector<1x16xf32>
    %30 = arith.addf %29, %28 : vector<1x16xf32>
    %31 = arith.divf %29, %30 : vector<1x16xf32>
    %32 = vector.extract_strided_slice %16 {offsets = [0, 32], sizes = [1, 16], strides = [1, 1]} : vector<1x64xf32> to vector<1x16xf32>
    %33 = math.tanh %32 : vector<1x16xf32>
    %34 = vector.extract_strided_slice %16 {offsets = [0, 48], sizes = [1, 16], strides = [1, 1]} : vector<1x64xf32> to vector<1x16xf32>
    %35 = arith.negf %34 : vector<1x16xf32>
    %36 = math.exp %35 : vector<1x16xf32>
    %cst_15 = arith.constant 1.000000e+00 : f32
    %37 = vector.broadcast %cst_15 : f32 to vector<1x16xf32>
    %38 = arith.addf %37, %36 : vector<1x16xf32>
    %39 = arith.divf %37, %38 : vector<1x16xf32>
    %40 = arith.mulf %31, %9 : vector<1x16xf32>
    %41 = arith.mulf %25, %33 : vector<1x16xf32>
    %42 = arith.addf %40, %41 : vector<1x16xf32>
    %43 = math.tanh %42 : vector<1x16xf32>
    %44 = arith.mulf %39, %43 : vector<1x16xf32>
    %45 = vector.extract_strided_slice %19 {offsets = [0, 0], sizes = [1, 16], strides = [1, 1]} : vector<1x64xf32> to vector<1x16xf32>
    %46 = arith.negf %45 : vector<1x16xf32>
    %47 = math.exp %46 : vector<1x16xf32>
    %cst_16 = arith.constant 1.000000e+00 : f32
    %48 = vector.broadcast %cst_16 : f32 to vector<1x16xf32>
    %49 = arith.addf %48, %47 : vector<1x16xf32>
    %50 = arith.divf %48, %49 : vector<1x16xf32>
    %51 = vector.extract_strided_slice %19 {offsets = [0, 16], sizes = [1, 16], strides = [1, 1]} : vector<1x64xf32> to vector<1x16xf32>
    %52 = arith.negf %51 : vector<1x16xf32>
    %53 = math.exp %52 : vector<1x16xf32>
    %cst_17 = arith.constant 1.000000e+00 : f32
    %54 = vector.broadcast %cst_17 : f32 to vector<1x16xf32>
    %55 = arith.addf %54, %53 : vector<1x16xf32>
    %56 = arith.divf %54, %55 : vector<1x16xf32>
    %57 = vector.extract_strided_slice %19 {offsets = [0, 32], sizes = [1, 16], strides = [1, 1]} : vector<1x64xf32> to vector<1x16xf32>
    %58 = math.tanh %57 : vector<1x16xf32>
    %59 = vector.extract_strided_slice %19 {offsets = [0, 48], sizes = [1, 16], strides = [1, 1]} : vector<1x64xf32> to vector<1x16xf32>
    %60 = arith.negf %59 : vector<1x16xf32>
    %61 = math.exp %60 : vector<1x16xf32>
    %cst_18 = arith.constant 1.000000e+00 : f32
    %62 = vector.broadcast %cst_18 : f32 to vector<1x16xf32>
    %63 = arith.addf %62, %61 : vector<1x16xf32>
    %64 = arith.divf %62, %63 : vector<1x16xf32>
    %65 = arith.mulf %56, %11 : vector<1x16xf32>
    %66 = arith.mulf %50, %58 : vector<1x16xf32>
    %67 = arith.addf %65, %66 : vector<1x16xf32>
    %68 = math.tanh %67 : vector<1x16xf32>
    %69 = arith.mulf %64, %68 : vector<1x16xf32>
    %c0_19 = arith.constant 0 : index
    %c0_20 = arith.constant 0 : index
    %70 = vector.load %arg12[%c0_19, %c0_20] : memref<8x32xf32, #tpu.memory_space<vmem>>, vector<1x16xf32>
    tpu.vector_store %arg12[%c0_19, %c0_20], %44 {strides = array<i32>} : memref<8x32xf32, #tpu.memory_space<vmem>>, vector<1x16xf32>,
    %c7 = arith.constant 7 : index
    %c16 = arith.constant 16 : index
    %71 = vector.load %arg12[%c7, %c16] : memref<8x32xf32, #tpu.memory_space<vmem>>, vector<1x16xf32>
    tpu.vector_store %arg12[%c7, %c16], %69 {strides = array<i32>} : memref<8x32xf32, #tpu.memory_space<vmem>>, vector<1x16xf32>,
    %72 = tpu.concatenate %44, %69 in 1 : vector<1x16xf32>, vector<1x16xf32> -> vector<1x32xf32>
    %cst_21 = arith.constant dense<0.000000e+00> : vector<1x128xf32>
    %73 = tpu.matmul %72, %7, %cst_21 {dimension_numbers = #tpu.dot_dimension_numbers<[1], [0], [0], [1], [0, 0, 1, 1], [], []>} : vector<1x32xf32>, vector<32x128xf32>, vector<1x128xf32> -> vector<1x128xf32>
    %74 = vector.extract_strided_slice %6 {offsets = [1, 0], sizes = [1, 64], strides = [1, 1]} : vector<8x128xf32> to vector<1x64xf32>
    %75 = vector.extract_strided_slice %73 {offsets = [0, 0], sizes = [1, 64], strides = [1, 1]} : vector<1x128xf32> to vector<1x64xf32>
    %76 = arith.addf %74, %75 : vector<1x64xf32>
    %77 = vector.extract_strided_slice %6 {offsets = [6, 64], sizes = [1, 64], strides = [1, 1]} : vector<8x128xf32> to vector<1x64xf32>
    %78 = vector.extract_strided_slice %73 {offsets = [0, 64], sizes = [1, 64], strides = [1, 1]} : vector<1x128xf32> to vector<1x64xf32>
    %79 = arith.addf %77, %78 : vector<1x64xf32>
    %80 = vector.extract_strided_slice %76 {offsets = [0, 0], sizes = [1, 16], strides = [1, 1]} : vector<1x64xf32> to vector<1x16xf32>
    %81 = arith.negf %80 : vector<1x16xf32>
    %82 = math.exp %81 : vector<1x16xf32>
    %cst_22 = arith.constant 1.000000e+00 : f32
    %83 = vector.broadcast %cst_22 : f32 to vector<1x16xf32>
    %84 = arith.addf %83, %82 : vector<1x16xf32>
    %85 = arith.divf %83, %84 : vector<1x16xf32>
    %86 = vector.extract_strided_slice %76 {offsets = [0, 16], sizes = [1, 16], strides = [1, 1]} : vector<1x64xf32> to vector<1x16xf32>
    %87 = arith.negf %86 : vector<1x16xf32>
    %88 = math.exp %87 : vector<1x16xf32>
    %cst_23 = arith.constant 1.000000e+00 : f32
    %89 = vector.broadcast %cst_23 : f32 to vector<1x16xf32>
    %90 = arith.addf %89, %88 : vector<1x16xf32>
    %91 = arith.divf %89, %90 : vector<1x16xf32>
    %92 = vector.extract_strided_slice %76 {offsets = [0, 32], sizes = [1, 16], strides = [1, 1]} : vector<1x64xf32> to vector<1x16xf32>
    %93 = math.tanh %92 : vector<1x16xf32>
    %94 = vector.extract_strided_slice %76 {offsets = [0, 48], sizes = [1, 16], strides = [1, 1]} : vector<1x64xf32> to vector<1x16xf32>
    %95 = arith.negf %94 : vector<1x16xf32>
    %96 = math.exp %95 : vector<1x16xf32>
    %cst_24 = arith.constant 1.000000e+00 : f32
    %97 = vector.broadcast %cst_24 : f32 to vector<1x16xf32>
    %98 = arith.addf %97, %96 : vector<1x16xf32>
    %99 = arith.divf %97, %98 : vector<1x16xf32>
    %100 = arith.mulf %91, %42 : vector<1x16xf32>
    %101 = arith.mulf %85, %93 : vector<1x16xf32>
    %102 = arith.addf %100, %101 : vector<1x16xf32>
    %103 = math.tanh %102 : vector<1x16xf32>
    %104 = arith.mulf %99, %103 : vector<1x16xf32>
    %105 = vector.extract_strided_slice %79 {offsets = [0, 0], sizes = [1, 16], strides = [1, 1]} : vector<1x64xf32> to vector<1x16xf32>
    %106 = arith.negf %105 : vector<1x16xf32>
    %107 = math.exp %106 : vector<1x16xf32>
    %cst_25 = arith.constant 1.000000e+00 : f32
    %108 = vector.broadcast %cst_25 : f32 to vector<1x16xf32>
    %109 = arith.addf %108, %107 : vector<1x16xf32>
    %110 = arith.divf %108, %109 : vector<1x16xf32>
    %111 = vector.extract_strided_slice %79 {offsets = [0, 16], sizes = [1, 16], strides = [1, 1]} : vector<1x64xf32> to vector<1x16xf32>
    %112 = arith.negf %111 : vector<1x16xf32>
    %113 = math.exp %112 : vector<1x16xf32>
    %cst_26 = arith.constant 1.000000e+00 : f32
    %114 = vector.broadcast %cst_26 : f32 to vector<1x16xf32>
    %115 = arith.addf %114, %113 : vector<1x16xf32>
    %116 = arith.divf %114, %115 : vector<1x16xf32>
    %117 = vector.extract_strided_slice %79 {offsets = [0, 32], sizes = [1, 16], strides = [1, 1]} : vector<1x64xf32> to vector<1x16xf32>
    %118 = math.tanh %117 : vector<1x16xf32>
    %119 = vector.extract_strided_slice %79 {offsets = [0, 48], sizes = [1, 16], strides = [1, 1]} : vector<1x64xf32> to vector<1x16xf32>
    %120 = arith.negf %119 : vector<1x16xf32>
    %121 = math.exp %120 : vector<1x16xf32>
    %cst_27 = arith.constant 1.000000e+00 : f32
    %122 = vector.broadcast %cst_27 : f32 to vector<1x16xf32>
    %123 = arith.addf %122, %121 : vector<1x16xf32>
    %124 = arith.divf %122, %123 : vector<1x16xf32>
    %125 = arith.mulf %116, %67 : vector<1x16xf32>
    %126 = arith.mulf %110, %118 : vector<1x16xf32>
    %127 = arith.addf %125, %126 : vector<1x16xf32>
    %128 = math.tanh %127 : vector<1x16xf32>
    %129 = arith.mulf %124, %128 : vector<1x16xf32>
    %c1 = arith.constant 1 : index
    %c0_28 = arith.constant 0 : index
    %130 = vector.load %arg12[%c1, %c0_28] : memref<8x32xf32, #tpu.memory_space<vmem>>, vector<1x16xf32>
    tpu.vector_store %arg12[%c1, %c0_28], %104 {strides = array<i32>} : memref<8x32xf32, #tpu.memory_space<vmem>>, vector<1x16xf32>,
    %c6 = arith.constant 6 : index
    %c16_29 = arith.constant 16 : index
    %131 = vector.load %arg12[%c6, %c16_29] : memref<8x32xf32, #tpu.memory_space<vmem>>, vector<1x16xf32>
    tpu.vector_store %arg12[%c6, %c16_29], %129 {strides = array<i32>} : memref<8x32xf32, #tpu.memory_space<vmem>>, vector<1x16xf32>,
    %132 = tpu.concatenate %104, %129 in 1 : vector<1x16xf32>, vector<1x16xf32> -> vector<1x32xf32>
    %cst_30 = arith.constant dense<0.000000e+00> : vector<1x128xf32>
    %133 = tpu.matmul %132, %7, %cst_30 {dimension_numbers = #tpu.dot_dimension_numbers<[1], [0], [0], [1], [0, 0, 1, 1], [], []>} : vector<1x32xf32>, vector<32x128xf32>, vector<1x128xf32> -> vector<1x128xf32>
    %134 = vector.extract_strided_slice %6 {offsets = [2, 0], sizes = [1, 64], strides = [1, 1]} : vector<8x128xf32> to vector<1x64xf32>
    %135 = vector.extract_strided_slice %133 {offsets = [0, 0], sizes = [1, 64], strides = [1, 1]} : vector<1x128xf32> to vector<1x64xf32>
    %136 = arith.addf %134, %135 : vector<1x64xf32>
    %137 = vector.extract_strided_slice %6 {offsets = [5, 64], sizes = [1, 64], strides = [1, 1]} : vector<8x128xf32> to vector<1x64xf32>
    %138 = vector.extract_strided_slice %133 {offsets = [0, 64], sizes = [1, 64], strides = [1, 1]} : vector<1x128xf32> to vector<1x64xf32>
    %139 = arith.addf %137, %138 : vector<1x64xf32>
    %140 = vector.extract_strided_slice %136 {offsets = [0, 0], sizes = [1, 16], strides = [1, 1]} : vector<1x64xf32> to vector<1x16xf32>
    %141 = arith.negf %140 : vector<1x16xf32>
    %142 = math.exp %141 : vector<1x16xf32>
    %cst_31 = arith.constant 1.000000e+00 : f32
    %143 = vector.broadcast %cst_31 : f32 to vector<1x16xf32>
    %144 = arith.addf %143, %142 : vector<1x16xf32>
    %145 = arith.divf %143, %144 : vector<1x16xf32>
    %146 = vector.extract_strided_slice %136 {offsets = [0, 16], sizes = [1, 16], strides = [1, 1]} : vector<1x64xf32> to vector<1x16xf32>
    %147 = arith.negf %146 : vector<1x16xf32>
    %148 = math.exp %147 : vector<1x16xf32>
    %cst_32 = arith.constant 1.000000e+00 : f32
    %149 = vector.broadcast %cst_32 : f32 to vector<1x16xf32>
    %150 = arith.addf %149, %148 : vector<1x16xf32>
    %151 = arith.divf %149, %150 : vector<1x16xf32>
    %152 = vector.extract_strided_slice %136 {offsets = [0, 32], sizes = [1, 16], strides = [1, 1]} : vector<1x64xf32> to vector<1x16xf32>
    %153 = math.tanh %152 : vector<1x16xf32>
    %154 = vector.extract_strided_slice %136 {offsets = [0, 48], sizes = [1, 16], strides = [1, 1]} : vector<1x64xf32> to vector<1x16xf32>
    %155 = arith.negf %154 : vector<1x16xf32>
    %156 = math.exp %155 : vector<1x16xf32>
    %cst_33 = arith.constant 1.000000e+00 : f32
    %157 = vector.broadcast %cst_33 : f32 to vector<1x16xf32>
    %158 = arith.addf %157, %156 : vector<1x16xf32>
    %159 = arith.divf %157, %158 : vector<1x16xf32>
    %160 = arith.mulf %151, %102 : vector<1x16xf32>
    %161 = arith.mulf %145, %153 : vector<1x16xf32>
    %162 = arith.addf %160, %161 : vector<1x16xf32>
    %163 = math.tanh %162 : vector<1x16xf32>
    %164 = arith.mulf %159, %163 : vector<1x16xf32>
    %165 = vector.extract_strided_slice %139 {offsets = [0, 0], sizes = [1, 16], strides = [1, 1]} : vector<1x64xf32> to vector<1x16xf32>
    %166 = arith.negf %165 : vector<1x16xf32>
    %167 = math.exp %166 : vector<1x16xf32>
    %cst_34 = arith.constant 1.000000e+00 : f32
    %168 = vector.broadcast %cst_34 : f32 to vector<1x16xf32>
    %169 = arith.addf %168, %167 : vector<1x16xf32>
    %170 = arith.divf %168, %169 : vector<1x16xf32>
    %171 = vector.extract_strided_slice %139 {offsets = [0, 16], sizes = [1, 16], strides = [1, 1]} : vector<1x64xf32> to vector<1x16xf32>
    %172 = arith.negf %171 : vector<1x16xf32>
    %173 = math.exp %172 : vector<1x16xf32>
    %cst_35 = arith.constant 1.000000e+00 : f32
    %174 = vector.broadcast %cst_35 : f32 to vector<1x16xf32>
    %175 = arith.addf %174, %173 : vector<1x16xf32>
    %176 = arith.divf %174, %175 : vector<1x16xf32>
    %177 = vector.extract_strided_slice %139 {offsets = [0, 32], sizes = [1, 16], strides = [1, 1]} : vector<1x64xf32> to vector<1x16xf32>
    %178 = math.tanh %177 : vector<1x16xf32>
    %179 = vector.extract_strided_slice %139 {offsets = [0, 48], sizes = [1, 16], strides = [1, 1]} : vector<1x64xf32> to vector<1x16xf32>
    %180 = arith.negf %179 : vector<1x16xf32>
    %181 = math.exp %180 : vector<1x16xf32>
    %cst_36 = arith.constant 1.000000e+00 : f32
    %182 = vector.broadcast %cst_36 : f32 to vector<1x16xf32>
    %183 = arith.addf %182, %181 : vector<1x16xf32>
    %184 = arith.divf %182, %183 : vector<1x16xf32>
    %185 = arith.mulf %176, %127 : vector<1x16xf32>
    %186 = arith.mulf %170, %178 : vector<1x16xf32>
    %187 = arith.addf %185, %186 : vector<1x16xf32>
    %188 = math.tanh %187 : vector<1x16xf32>
    %189 = arith.mulf %184, %188 : vector<1x16xf32>
    %c2 = arith.constant 2 : index
    %c0_37 = arith.constant 0 : index
    %190 = vector.load %arg12[%c2, %c0_37] : memref<8x32xf32, #tpu.memory_space<vmem>>, vector<1x16xf32>
    tpu.vector_store %arg12[%c2, %c0_37], %164 {strides = array<i32>} : memref<8x32xf32, #tpu.memory_space<vmem>>, vector<1x16xf32>,
    %c5 = arith.constant 5 : index
    %c16_38 = arith.constant 16 : index
    %191 = vector.load %arg12[%c5, %c16_38] : memref<8x32xf32, #tpu.memory_space<vmem>>, vector<1x16xf32>
    tpu.vector_store %arg12[%c5, %c16_38], %189 {strides = array<i32>} : memref<8x32xf32, #tpu.memory_space<vmem>>, vector<1x16xf32>,
    %192 = tpu.concatenate %164, %189 in 1 : vector<1x16xf32>, vector<1x16xf32> -> vector<1x32xf32>
    %cst_39 = arith.constant dense<0.000000e+00> : vector<1x128xf32>
    %193 = tpu.matmul %192, %7, %cst_39 {dimension_numbers = #tpu.dot_dimension_numbers<[1], [0], [0], [1], [0, 0, 1, 1], [], []>} : vector<1x32xf32>, vector<32x128xf32>, vector<1x128xf32> -> vector<1x128xf32>
    %194 = vector.extract_strided_slice %6 {offsets = [3, 0], sizes = [1, 64], strides = [1, 1]} : vector<8x128xf32> to vector<1x64xf32>
    %195 = vector.extract_strided_slice %193 {offsets = [0, 0], sizes = [1, 64], strides = [1, 1]} : vector<1x128xf32> to vector<1x64xf32>
    %196 = arith.addf %194, %195 : vector<1x64xf32>
    %197 = vector.extract_strided_slice %6 {offsets = [4, 64], sizes = [1, 64], strides = [1, 1]} : vector<8x128xf32> to vector<1x64xf32>
    %198 = vector.extract_strided_slice %193 {offsets = [0, 64], sizes = [1, 64], strides = [1, 1]} : vector<1x128xf32> to vector<1x64xf32>
    %199 = arith.addf %197, %198 : vector<1x64xf32>
    %200 = vector.extract_strided_slice %196 {offsets = [0, 0], sizes = [1, 16], strides = [1, 1]} : vector<1x64xf32> to vector<1x16xf32>
    %201 = arith.negf %200 : vector<1x16xf32>
    %202 = math.exp %201 : vector<1x16xf32>
    %cst_40 = arith.constant 1.000000e+00 : f32
    %203 = vector.broadcast %cst_40 : f32 to vector<1x16xf32>
    %204 = arith.addf %203, %202 : vector<1x16xf32>
    %205 = arith.divf %203, %204 : vector<1x16xf32>
    %206 = vector.extract_strided_slice %196 {offsets = [0, 16], sizes = [1, 16], strides = [1, 1]} : vector<1x64xf32> to vector<1x16xf32>
    %207 = arith.negf %206 : vector<1x16xf32>
    %208 = math.exp %207 : vector<1x16xf32>
    %cst_41 = arith.constant 1.000000e+00 : f32
    %209 = vector.broadcast %cst_41 : f32 to vector<1x16xf32>
    %210 = arith.addf %209, %208 : vector<1x16xf32>
    %211 = arith.divf %209, %210 : vector<1x16xf32>
    %212 = vector.extract_strided_slice %196 {offsets = [0, 32], sizes = [1, 16], strides = [1, 1]} : vector<1x64xf32> to vector<1x16xf32>
    %213 = math.tanh %212 : vector<1x16xf32>
    %214 = vector.extract_strided_slice %196 {offsets = [0, 48], sizes = [1, 16], strides = [1, 1]} : vector<1x64xf32> to vector<1x16xf32>
    %215 = arith.negf %214 : vector<1x16xf32>
    %216 = math.exp %215 : vector<1x16xf32>
    %cst_42 = arith.constant 1.000000e+00 : f32
    %217 = vector.broadcast %cst_42 : f32 to vector<1x16xf32>
    %218 = arith.addf %217, %216 : vector<1x16xf32>
    %219 = arith.divf %217, %218 : vector<1x16xf32>
    %220 = arith.mulf %211, %162 : vector<1x16xf32>
    %221 = arith.mulf %205, %213 : vector<1x16xf32>
    %222 = arith.addf %220, %221 : vector<1x16xf32>
    %223 = math.tanh %222 : vector<1x16xf32>
    %224 = arith.mulf %219, %223 : vector<1x16xf32>
    %225 = vector.extract_strided_slice %199 {offsets = [0, 0], sizes = [1, 16], strides = [1, 1]} : vector<1x64xf32> to vector<1x16xf32>
    %226 = arith.negf %225 : vector<1x16xf32>
    %227 = math.exp %226 : vector<1x16xf32>
    %cst_43 = arith.constant 1.000000e+00 : f32
    %228 = vector.broadcast %cst_43 : f32 to vector<1x16xf32>
    %229 = arith.addf %228, %227 : vector<1x16xf32>
    %230 = arith.divf %228, %229 : vector<1x16xf32>
    %231 = vector.extract_strided_slice %199 {offsets = [0, 16], sizes = [1, 16], strides = [1, 1]} : vector<1x64xf32> to vector<1x16xf32>
    %232 = arith.negf %231 : vector<1x16xf32>
    %233 = math.exp %232 : vector<1x16xf32>
    %cst_44 = arith.constant 1.000000e+00 : f32
    %234 = vector.broadcast %cst_44 : f32 to vector<1x16xf32>
    %235 = arith.addf %234, %233 : vector<1x16xf32>
    %236 = arith.divf %234, %235 : vector<1x16xf32>
    %237 = vector.extract_strided_slice %199 {offsets = [0, 32], sizes = [1, 16], strides = [1, 1]} : vector<1x64xf32> to vector<1x16xf32>
    %238 = math.tanh %237 : vector<1x16xf32>
    %239 = vector.extract_strided_slice %199 {offsets = [0, 48], sizes = [1, 16], strides = [1, 1]} : vector<1x64xf32> to vector<1x16xf32>
    %240 = arith.negf %239 : vector<1x16xf32>
    %241 = math.exp %240 : vector<1x16xf32>
    %cst_45 = arith.constant 1.000000e+00 : f32
    %242 = vector.broadcast %cst_45 : f32 to vector<1x16xf32>
    %243 = arith.addf %242, %241 : vector<1x16xf32>
    %244 = arith.divf %242, %243 : vector<1x16xf32>
    %245 = arith.mulf %236, %187 : vector<1x16xf32>
    %246 = arith.mulf %230, %238 : vector<1x16xf32>
    %247 = arith.addf %245, %246 : vector<1x16xf32>
    %248 = math.tanh %247 : vector<1x16xf32>
    %249 = arith.mulf %244, %248 : vector<1x16xf32>
    %c3 = arith.constant 3 : index
    %c0_46 = arith.constant 0 : index
    %250 = vector.load %arg12[%c3, %c0_46] : memref<8x32xf32, #tpu.memory_space<vmem>>, vector<1x16xf32>
    tpu.vector_store %arg12[%c3, %c0_46], %224 {strides = array<i32>} : memref<8x32xf32, #tpu.memory_space<vmem>>, vector<1x16xf32>,
    %c4 = arith.constant 4 : index
    %c16_47 = arith.constant 16 : index
    %251 = vector.load %arg12[%c4, %c16_47] : memref<8x32xf32, #tpu.memory_space<vmem>>, vector<1x16xf32>
    tpu.vector_store %arg12[%c4, %c16_47], %249 {strides = array<i32>} : memref<8x32xf32, #tpu.memory_space<vmem>>, vector<1x16xf32>,
    %252 = tpu.concatenate %224, %249 in 1 : vector<1x16xf32>, vector<1x16xf32> -> vector<1x32xf32>
    %cst_48 = arith.constant dense<0.000000e+00> : vector<1x128xf32>
    %253 = tpu.matmul %252, %7, %cst_48 {dimension_numbers = #tpu.dot_dimension_numbers<[1], [0], [0], [1], [0, 0, 1, 1], [], []>} : vector<1x32xf32>, vector<32x128xf32>, vector<1x128xf32> -> vector<1x128xf32>
    %254 = vector.extract_strided_slice %6 {offsets = [4, 0], sizes = [1, 64], strides = [1, 1]} : vector<8x128xf32> to vector<1x64xf32>
    %255 = vector.extract_strided_slice %253 {offsets = [0, 0], sizes = [1, 64], strides = [1, 1]} : vector<1x128xf32> to vector<1x64xf32>
    %256 = arith.addf %254, %255 : vector<1x64xf32>
    %257 = vector.extract_strided_slice %6 {offsets = [3, 64], sizes = [1, 64], strides = [1, 1]} : vector<8x128xf32> to vector<1x64xf32>
    %258 = vector.extract_strided_slice %253 {offsets = [0, 64], sizes = [1, 64], strides = [1, 1]} : vector<1x128xf32> to vector<1x64xf32>
    %259 = arith.addf %257, %258 : vector<1x64xf32>
    %260 = vector.extract_strided_slice %256 {offsets = [0, 0], sizes = [1, 16], strides = [1, 1]} : vector<1x64xf32> to vector<1x16xf32>
    %261 = arith.negf %260 : vector<1x16xf32>
    %262 = math.exp %261 : vector<1x16xf32>
    %cst_49 = arith.constant 1.000000e+00 : f32
    %263 = vector.broadcast %cst_49 : f32 to vector<1x16xf32>
    %264 = arith.addf %263, %262 : vector<1x16xf32>
    %265 = arith.divf %263, %264 : vector<1x16xf32>
    %266 = vector.extract_strided_slice %256 {offsets = [0, 16], sizes = [1, 16], strides = [1, 1]} : vector<1x64xf32> to vector<1x16xf32>
    %267 = arith.negf %266 : vector<1x16xf32>
    %268 = math.exp %267 : vector<1x16xf32>
    %cst_50 = arith.constant 1.000000e+00 : f32
    %269 = vector.broadcast %cst_50 : f32 to vector<1x16xf32>
    %270 = arith.addf %269, %268 : vector<1x16xf32>
    %271 = arith.divf %269, %270 : vector<1x16xf32>
    %272 = vector.extract_strided_slice %256 {offsets = [0, 32], sizes = [1, 16], strides = [1, 1]} : vector<1x64xf32> to vector<1x16xf32>
    %273 = math.tanh %272 : vector<1x16xf32>
    %274 = vector.extract_strided_slice %256 {offsets = [0, 48], sizes = [1, 16], strides = [1, 1]} : vector<1x64xf32> to vector<1x16xf32>
    %275 = arith.negf %274 : vector<1x16xf32>
    %276 = math.exp %275 : vector<1x16xf32>
    %cst_51 = arith.constant 1.000000e+00 : f32
    %277 = vector.broadcast %cst_51 : f32 to vector<1x16xf32>
    %278 = arith.addf %277, %276 : vector<1x16xf32>
    %279 = arith.divf %277, %278 : vector<1x16xf32>
    %280 = arith.mulf %271, %222 : vector<1x16xf32>
    %281 = arith.mulf %265, %273 : vector<1x16xf32>
    %282 = arith.addf %280, %281 : vector<1x16xf32>
    %283 = math.tanh %282 : vector<1x16xf32>
    %284 = arith.mulf %279, %283 : vector<1x16xf32>
    %285 = vector.extract_strided_slice %259 {offsets = [0, 0], sizes = [1, 16], strides = [1, 1]} : vector<1x64xf32> to vector<1x16xf32>
    %286 = arith.negf %285 : vector<1x16xf32>
    %287 = math.exp %286 : vector<1x16xf32>
    %cst_52 = arith.constant 1.000000e+00 : f32
    %288 = vector.broadcast %cst_52 : f32 to vector<1x16xf32>
    %289 = arith.addf %288, %287 : vector<1x16xf32>
    %290 = arith.divf %288, %289 : vector<1x16xf32>
    %291 = vector.extract_strided_slice %259 {offsets = [0, 16], sizes = [1, 16], strides = [1, 1]} : vector<1x64xf32> to vector<1x16xf32>
    %292 = arith.negf %291 : vector<1x16xf32>
    %293 = math.exp %292 : vector<1x16xf32>
    %cst_53 = arith.constant 1.000000e+00 : f32
    %294 = vector.broadcast %cst_53 : f32 to vector<1x16xf32>
    %295 = arith.addf %294, %293 : vector<1x16xf32>
    %296 = arith.divf %294, %295 : vector<1x16xf32>
    %297 = vector.extract_strided_slice %259 {offsets = [0, 32], sizes = [1, 16], strides = [1, 1]} : vector<1x64xf32> to vector<1x16xf32>
    %298 = math.tanh %297 : vector<1x16xf32>
    %299 = vector.extract_strided_slice %259 {offsets = [0, 48], sizes = [1, 16], strides = [1, 1]} : vector<1x64xf32> to vector<1x16xf32>
    %300 = arith.negf %299 : vector<1x16xf32>
    %301 = math.exp %300 : vector<1x16xf32>
    %cst_54 = arith.constant 1.000000e+00 : f32
    %302 = vector.broadcast %cst_54 : f32 to vector<1x16xf32>
    %303 = arith.addf %302, %301 : vector<1x16xf32>
    %304 = arith.divf %302, %303 : vector<1x16xf32>
    %305 = arith.mulf %296, %247 : vector<1x16xf32>
    %306 = arith.mulf %290, %298 : vector<1x16xf32>
    %307 = arith.addf %305, %306 : vector<1x16xf32>
    %308 = math.tanh %307 : vector<1x16xf32>
    %309 = arith.mulf %304, %308 : vector<1x16xf32>
    %c4_55 = arith.constant 4 : index
    %c0_56 = arith.constant 0 : index
    %310 = vector.load %arg12[%c4_55, %c0_56] : memref<8x32xf32, #tpu.memory_space<vmem>>, vector<1x16xf32>
    tpu.vector_store %arg12[%c4_55, %c0_56], %284 {strides = array<i32>} : memref<8x32xf32, #tpu.memory_space<vmem>>, vector<1x16xf32>,
    %c3_57 = arith.constant 3 : index
    %c16_58 = arith.constant 16 : index
    %311 = vector.load %arg12[%c3_57, %c16_58] : memref<8x32xf32, #tpu.memory_space<vmem>>, vector<1x16xf32>
    tpu.vector_store %arg12[%c3_57, %c16_58], %309 {strides = array<i32>} : memref<8x32xf32, #tpu.memory_space<vmem>>, vector<1x16xf32>,
    %312 = tpu.concatenate %284, %309 in 1 : vector<1x16xf32>, vector<1x16xf32> -> vector<1x32xf32>
    %cst_59 = arith.constant dense<0.000000e+00> : vector<1x128xf32>
    %313 = tpu.matmul %312, %7, %cst_59 {dimension_numbers = #tpu.dot_dimension_numbers<[1], [0], [0], [1], [0, 0, 1, 1], [], []>} : vector<1x32xf32>, vector<32x128xf32>, vector<1x128xf32> -> vector<1x128xf32>
    %314 = vector.extract_strided_slice %6 {offsets = [5, 0], sizes = [1, 64], strides = [1, 1]} : vector<8x128xf32> to vector<1x64xf32>
    %315 = vector.extract_strided_slice %313 {offsets = [0, 0], sizes = [1, 64], strides = [1, 1]} : vector<1x128xf32> to vector<1x64xf32>
    %316 = arith.addf %314, %315 : vector<1x64xf32>
    %317 = vector.extract_strided_slice %6 {offsets = [2, 64], sizes = [1, 64], strides = [1, 1]} : vector<8x128xf32> to vector<1x64xf32>
    %318 = vector.extract_strided_slice %313 {offsets = [0, 64], sizes = [1, 64], strides = [1, 1]} : vector<1x128xf32> to vector<1x64xf32>
    %319 = arith.addf %317, %318 : vector<1x64xf32>
    %320 = vector.extract_strided_slice %316 {offsets = [0, 0], sizes = [1, 16], strides = [1, 1]} : vector<1x64xf32> to vector<1x16xf32>
    %321 = arith.negf %320 : vector<1x16xf32>
    %322 = math.exp %321 : vector<1x16xf32>
    %cst_60 = arith.constant 1.000000e+00 : f32
    %323 = vector.broadcast %cst_60 : f32 to vector<1x16xf32>
    %324 = arith.addf %323, %322 : vector<1x16xf32>
    %325 = arith.divf %323, %324 : vector<1x16xf32>
    %326 = vector.extract_strided_slice %316 {offsets = [0, 16], sizes = [1, 16], strides = [1, 1]} : vector<1x64xf32> to vector<1x16xf32>
    %327 = arith.negf %326 : vector<1x16xf32>
    %328 = math.exp %327 : vector<1x16xf32>
    %cst_61 = arith.constant 1.000000e+00 : f32
    %329 = vector.broadcast %cst_61 : f32 to vector<1x16xf32>
    %330 = arith.addf %329, %328 : vector<1x16xf32>
    %331 = arith.divf %329, %330 : vector<1x16xf32>
    %332 = vector.extract_strided_slice %316 {offsets = [0, 32], sizes = [1, 16], strides = [1, 1]} : vector<1x64xf32> to vector<1x16xf32>
    %333 = math.tanh %332 : vector<1x16xf32>
    %334 = vector.extract_strided_slice %316 {offsets = [0, 48], sizes = [1, 16], strides = [1, 1]} : vector<1x64xf32> to vector<1x16xf32>
    %335 = arith.negf %334 : vector<1x16xf32>
    %336 = math.exp %335 : vector<1x16xf32>
    %cst_62 = arith.constant 1.000000e+00 : f32
    %337 = vector.broadcast %cst_62 : f32 to vector<1x16xf32>
    %338 = arith.addf %337, %336 : vector<1x16xf32>
    %339 = arith.divf %337, %338 : vector<1x16xf32>
    %340 = arith.mulf %331, %282 : vector<1x16xf32>
    %341 = arith.mulf %325, %333 : vector<1x16xf32>
    %342 = arith.addf %340, %341 : vector<1x16xf32>
    %343 = math.tanh %342 : vector<1x16xf32>
    %344 = arith.mulf %339, %343 : vector<1x16xf32>
    %345 = vector.extract_strided_slice %319 {offsets = [0, 0], sizes = [1, 16], strides = [1, 1]} : vector<1x64xf32> to vector<1x16xf32>
    %346 = arith.negf %345 : vector<1x16xf32>
    %347 = math.exp %346 : vector<1x16xf32>
    %cst_63 = arith.constant 1.000000e+00 : f32
    %348 = vector.broadcast %cst_63 : f32 to vector<1x16xf32>
    %349 = arith.addf %348, %347 : vector<1x16xf32>
    %350 = arith.divf %348, %349 : vector<1x16xf32>
    %351 = vector.extract_strided_slice %319 {offsets = [0, 16], sizes = [1, 16], strides = [1, 1]} : vector<1x64xf32> to vector<1x16xf32>
    %352 = arith.negf %351 : vector<1x16xf32>
    %353 = math.exp %352 : vector<1x16xf32>
    %cst_64 = arith.constant 1.000000e+00 : f32
    %354 = vector.broadcast %cst_64 : f32 to vector<1x16xf32>
    %355 = arith.addf %354, %353 : vector<1x16xf32>
    %356 = arith.divf %354, %355 : vector<1x16xf32>
    %357 = vector.extract_strided_slice %319 {offsets = [0, 32], sizes = [1, 16], strides = [1, 1]} : vector<1x64xf32> to vector<1x16xf32>
    %358 = math.tanh %357 : vector<1x16xf32>
    %359 = vector.extract_strided_slice %319 {offsets = [0, 48], sizes = [1, 16], strides = [1, 1]} : vector<1x64xf32> to vector<1x16xf32>
    %360 = arith.negf %359 : vector<1x16xf32>
    %361 = math.exp %360 : vector<1x16xf32>
    %cst_65 = arith.constant 1.000000e+00 : f32
    %362 = vector.broadcast %cst_65 : f32 to vector<1x16xf32>
    %363 = arith.addf %362, %361 : vector<1x16xf32>
    %364 = arith.divf %362, %363 : vector<1x16xf32>
    %365 = arith.mulf %356, %307 : vector<1x16xf32>
    %366 = arith.mulf %350, %358 : vector<1x16xf32>
    %367 = arith.addf %365, %366 : vector<1x16xf32>
    %368 = math.tanh %367 : vector<1x16xf32>
    %369 = arith.mulf %364, %368 : vector<1x16xf32>
    %c5_66 = arith.constant 5 : index
    %c0_67 = arith.constant 0 : index
    %370 = vector.load %arg12[%c5_66, %c0_67] : memref<8x32xf32, #tpu.memory_space<vmem>>, vector<1x16xf32>
    tpu.vector_store %arg12[%c5_66, %c0_67], %344 {strides = array<i32>} : memref<8x32xf32, #tpu.memory_space<vmem>>, vector<1x16xf32>,
    %c2_68 = arith.constant 2 : index
    %c16_69 = arith.constant 16 : index
    %371 = vector.load %arg12[%c2_68, %c16_69] : memref<8x32xf32, #tpu.memory_space<vmem>>, vector<1x16xf32>
    tpu.vector_store %arg12[%c2_68, %c16_69], %369 {strides = array<i32>} : memref<8x32xf32, #tpu.memory_space<vmem>>, vector<1x16xf32>,
    %372 = tpu.concatenate %344, %369 in 1 : vector<1x16xf32>, vector<1x16xf32> -> vector<1x32xf32>
    %cst_70 = arith.constant dense<0.000000e+00> : vector<1x128xf32>
    %373 = tpu.matmul %372, %7, %cst_70 {dimension_numbers = #tpu.dot_dimension_numbers<[1], [0], [0], [1], [0, 0, 1, 1], [], []>} : vector<1x32xf32>, vector<32x128xf32>, vector<1x128xf32> -> vector<1x128xf32>
    %374 = vector.extract_strided_slice %6 {offsets = [6, 0], sizes = [1, 64], strides = [1, 1]} : vector<8x128xf32> to vector<1x64xf32>
    %375 = vector.extract_strided_slice %373 {offsets = [0, 0], sizes = [1, 64], strides = [1, 1]} : vector<1x128xf32> to vector<1x64xf32>
    %376 = arith.addf %374, %375 : vector<1x64xf32>
    %377 = vector.extract_strided_slice %6 {offsets = [1, 64], sizes = [1, 64], strides = [1, 1]} : vector<8x128xf32> to vector<1x64xf32>
    %378 = vector.extract_strided_slice %373 {offsets = [0, 64], sizes = [1, 64], strides = [1, 1]} : vector<1x128xf32> to vector<1x64xf32>
    %379 = arith.addf %377, %378 : vector<1x64xf32>
    %380 = vector.extract_strided_slice %376 {offsets = [0, 0], sizes = [1, 16], strides = [1, 1]} : vector<1x64xf32> to vector<1x16xf32>
    %381 = arith.negf %380 : vector<1x16xf32>
    %382 = math.exp %381 : vector<1x16xf32>
    %cst_71 = arith.constant 1.000000e+00 : f32
    %383 = vector.broadcast %cst_71 : f32 to vector<1x16xf32>
    %384 = arith.addf %383, %382 : vector<1x16xf32>
    %385 = arith.divf %383, %384 : vector<1x16xf32>
    %386 = vector.extract_strided_slice %376 {offsets = [0, 16], sizes = [1, 16], strides = [1, 1]} : vector<1x64xf32> to vector<1x16xf32>
    %387 = arith.negf %386 : vector<1x16xf32>
    %388 = math.exp %387 : vector<1x16xf32>
    %cst_72 = arith.constant 1.000000e+00 : f32
    %389 = vector.broadcast %cst_72 : f32 to vector<1x16xf32>
    %390 = arith.addf %389, %388 : vector<1x16xf32>
    %391 = arith.divf %389, %390 : vector<1x16xf32>
    %392 = vector.extract_strided_slice %376 {offsets = [0, 32], sizes = [1, 16], strides = [1, 1]} : vector<1x64xf32> to vector<1x16xf32>
    %393 = math.tanh %392 : vector<1x16xf32>
    %394 = vector.extract_strided_slice %376 {offsets = [0, 48], sizes = [1, 16], strides = [1, 1]} : vector<1x64xf32> to vector<1x16xf32>
    %395 = arith.negf %394 : vector<1x16xf32>
    %396 = math.exp %395 : vector<1x16xf32>
    %cst_73 = arith.constant 1.000000e+00 : f32
    %397 = vector.broadcast %cst_73 : f32 to vector<1x16xf32>
    %398 = arith.addf %397, %396 : vector<1x16xf32>
    %399 = arith.divf %397, %398 : vector<1x16xf32>
    %400 = arith.mulf %391, %342 : vector<1x16xf32>
    %401 = arith.mulf %385, %393 : vector<1x16xf32>
    %402 = arith.addf %400, %401 : vector<1x16xf32>
    %403 = math.tanh %402 : vector<1x16xf32>
    %404 = arith.mulf %399, %403 : vector<1x16xf32>
    %405 = vector.extract_strided_slice %379 {offsets = [0, 0], sizes = [1, 16], strides = [1, 1]} : vector<1x64xf32> to vector<1x16xf32>
    %406 = arith.negf %405 : vector<1x16xf32>
    %407 = math.exp %406 : vector<1x16xf32>
    %cst_74 = arith.constant 1.000000e+00 : f32
    %408 = vector.broadcast %cst_74 : f32 to vector<1x16xf32>
    %409 = arith.addf %408, %407 : vector<1x16xf32>
    %410 = arith.divf %408, %409 : vector<1x16xf32>
    %411 = vector.extract_strided_slice %379 {offsets = [0, 16], sizes = [1, 16], strides = [1, 1]} : vector<1x64xf32> to vector<1x16xf32>
    %412 = arith.negf %411 : vector<1x16xf32>
    %413 = math.exp %412 : vector<1x16xf32>
    %cst_75 = arith.constant 1.000000e+00 : f32
    %414 = vector.broadcast %cst_75 : f32 to vector<1x16xf32>
    %415 = arith.addf %414, %413 : vector<1x16xf32>
    %416 = arith.divf %414, %415 : vector<1x16xf32>
    %417 = vector.extract_strided_slice %379 {offsets = [0, 32], sizes = [1, 16], strides = [1, 1]} : vector<1x64xf32> to vector<1x16xf32>
    %418 = math.tanh %417 : vector<1x16xf32>
    %419 = vector.extract_strided_slice %379 {offsets = [0, 48], sizes = [1, 16], strides = [1, 1]} : vector<1x64xf32> to vector<1x16xf32>
    %420 = arith.negf %419 : vector<1x16xf32>
    %421 = math.exp %420 : vector<1x16xf32>
    %cst_76 = arith.constant 1.000000e+00 : f32
    %422 = vector.broadcast %cst_76 : f32 to vector<1x16xf32>
    %423 = arith.addf %422, %421 : vector<1x16xf32>
    %424 = arith.divf %422, %423 : vector<1x16xf32>
    %425 = arith.mulf %416, %367 : vector<1x16xf32>
    %426 = arith.mulf %410, %418 : vector<1x16xf32>
    %427 = arith.addf %425, %426 : vector<1x16xf32>
    %428 = math.tanh %427 : vector<1x16xf32>
    %429 = arith.mulf %424, %428 : vector<1x16xf32>
    %c6_77 = arith.constant 6 : index
    %c0_78 = arith.constant 0 : index
    %430 = vector.load %arg12[%c6_77, %c0_78] : memref<8x32xf32, #tpu.memory_space<vmem>>, vector<1x16xf32>
    tpu.vector_store %arg12[%c6_77, %c0_78], %404 {strides = array<i32>} : memref<8x32xf32, #tpu.memory_space<vmem>>, vector<1x16xf32>,
    %c1_79 = arith.constant 1 : index
    %c16_80 = arith.constant 16 : index
    %431 = vector.load %arg12[%c1_79, %c16_80] : memref<8x32xf32, #tpu.memory_space<vmem>>, vector<1x16xf32>
    tpu.vector_store %arg12[%c1_79, %c16_80], %429 {strides = array<i32>} : memref<8x32xf32, #tpu.memory_space<vmem>>, vector<1x16xf32>,
    %432 = tpu.concatenate %404, %429 in 1 : vector<1x16xf32>, vector<1x16xf32> -> vector<1x32xf32>
    %cst_81 = arith.constant dense<0.000000e+00> : vector<1x128xf32>
    %433 = tpu.matmul %432, %7, %cst_81 {dimension_numbers = #tpu.dot_dimension_numbers<[1], [0], [0], [1], [0, 0, 1, 1], [], []>} : vector<1x32xf32>, vector<32x128xf32>, vector<1x128xf32> -> vector<1x128xf32>
    %434 = vector.extract_strided_slice %6 {offsets = [7, 0], sizes = [1, 64], strides = [1, 1]} : vector<8x128xf32> to vector<1x64xf32>
    %435 = vector.extract_strided_slice %433 {offsets = [0, 0], sizes = [1, 64], strides = [1, 1]} : vector<1x128xf32> to vector<1x64xf32>
    %436 = arith.addf %434, %435 : vector<1x64xf32>
    %437 = vector.extract_strided_slice %6 {offsets = [0, 64], sizes = [1, 64], strides = [1, 1]} : vector<8x128xf32> to vector<1x64xf32>
    %438 = vector.extract_strided_slice %433 {offsets = [0, 64], sizes = [1, 64], strides = [1, 1]} : vector<1x128xf32> to vector<1x64xf32>
    %439 = arith.addf %437, %438 : vector<1x64xf32>
    %440 = vector.extract_strided_slice %436 {offsets = [0, 0], sizes = [1, 16], strides = [1, 1]} : vector<1x64xf32> to vector<1x16xf32>
    %441 = arith.negf %440 : vector<1x16xf32>
    %442 = math.exp %441 : vector<1x16xf32>
    %cst_82 = arith.constant 1.000000e+00 : f32
    %443 = vector.broadcast %cst_82 : f32 to vector<1x16xf32>
    %444 = arith.addf %443, %442 : vector<1x16xf32>
    %445 = arith.divf %443, %444 : vector<1x16xf32>
    %446 = vector.extract_strided_slice %436 {offsets = [0, 16], sizes = [1, 16], strides = [1, 1]} : vector<1x64xf32> to vector<1x16xf32>
    %447 = arith.negf %446 : vector<1x16xf32>
    %448 = math.exp %447 : vector<1x16xf32>
    %cst_83 = arith.constant 1.000000e+00 : f32
    %449 = vector.broadcast %cst_83 : f32 to vector<1x16xf32>
    %450 = arith.addf %449, %448 : vector<1x16xf32>
    %451 = arith.divf %449, %450 : vector<1x16xf32>
    %452 = vector.extract_strided_slice %436 {offsets = [0, 32], sizes = [1, 16], strides = [1, 1]} : vector<1x64xf32> to vector<1x16xf32>
    %453 = math.tanh %452 : vector<1x16xf32>
    %454 = vector.extract_strided_slice %436 {offsets = [0, 48], sizes = [1, 16], strides = [1, 1]} : vector<1x64xf32> to vector<1x16xf32>
    %455 = arith.negf %454 : vector<1x16xf32>
    %456 = math.exp %455 : vector<1x16xf32>
    %cst_84 = arith.constant 1.000000e+00 : f32
    %457 = vector.broadcast %cst_84 : f32 to vector<1x16xf32>
    %458 = arith.addf %457, %456 : vector<1x16xf32>
    %459 = arith.divf %457, %458 : vector<1x16xf32>
    %460 = arith.mulf %451, %402 : vector<1x16xf32>
    %461 = arith.mulf %445, %453 : vector<1x16xf32>
    %462 = arith.addf %460, %461 : vector<1x16xf32>
    %463 = math.tanh %462 : vector<1x16xf32>
    %464 = arith.mulf %459, %463 : vector<1x16xf32>
    %465 = vector.extract_strided_slice %439 {offsets = [0, 0], sizes = [1, 16], strides = [1, 1]} : vector<1x64xf32> to vector<1x16xf32>
    %466 = arith.negf %465 : vector<1x16xf32>
    %467 = math.exp %466 : vector<1x16xf32>
    %cst_85 = arith.constant 1.000000e+00 : f32
    %468 = vector.broadcast %cst_85 : f32 to vector<1x16xf32>
    %469 = arith.addf %468, %467 : vector<1x16xf32>
    %470 = arith.divf %468, %469 : vector<1x16xf32>
    %471 = vector.extract_strided_slice %439 {offsets = [0, 16], sizes = [1, 16], strides = [1, 1]} : vector<1x64xf32> to vector<1x16xf32>
    %472 = arith.negf %471 : vector<1x16xf32>
    %473 = math.exp %472 : vector<1x16xf32>
    %cst_86 = arith.constant 1.000000e+00 : f32
    %474 = vector.broadcast %cst_86 : f32 to vector<1x16xf32>
    %475 = arith.addf %474, %473 : vector<1x16xf32>
    %476 = arith.divf %474, %475 : vector<1x16xf32>
    %477 = vector.extract_strided_slice %439 {offsets = [0, 32], sizes = [1, 16], strides = [1, 1]} : vector<1x64xf32> to vector<1x16xf32>
    %478 = math.tanh %477 : vector<1x16xf32>
    %479 = vector.extract_strided_slice %439 {offsets = [0, 48], sizes = [1, 16], strides = [1, 1]} : vector<1x64xf32> to vector<1x16xf32>
    %480 = arith.negf %479 : vector<1x16xf32>
    %481 = math.exp %480 : vector<1x16xf32>
    %cst_87 = arith.constant 1.000000e+00 : f32
    %482 = vector.broadcast %cst_87 : f32 to vector<1x16xf32>
    %483 = arith.addf %482, %481 : vector<1x16xf32>
    %484 = arith.divf %482, %483 : vector<1x16xf32>
    %485 = arith.mulf %476, %427 : vector<1x16xf32>
    %486 = arith.mulf %470, %478 : vector<1x16xf32>
    %487 = arith.addf %485, %486 : vector<1x16xf32>
    %488 = math.tanh %487 : vector<1x16xf32>
    %489 = arith.mulf %484, %488 : vector<1x16xf32>
    %c7_88 = arith.constant 7 : index
    %c0_89 = arith.constant 0 : index
    %490 = vector.load %arg12[%c7_88, %c0_89] : memref<8x32xf32, #tpu.memory_space<vmem>>, vector<1x16xf32>
    tpu.vector_store %arg12[%c7_88, %c0_89], %464 {strides = array<i32>} : memref<8x32xf32, #tpu.memory_space<vmem>>, vector<1x16xf32>,
    %c0_90 = arith.constant 0 : index
    %c16_91 = arith.constant 16 : index
    %491 = vector.load %arg12[%c0_90, %c16_91] : memref<8x32xf32, #tpu.memory_space<vmem>>, vector<1x16xf32>
    tpu.vector_store %arg12[%c0_90, %c16_91], %489 {strides = array<i32>} : memref<8x32xf32, #tpu.memory_space<vmem>>, vector<1x16xf32>,
    %c0_92 = arith.constant 0 : index
    %c0_93 = arith.constant 0 : index
    %492 = vector.load %arg12[%c0_92, %c0_93] : memref<8x32xf32, #tpu.memory_space<vmem>>, vector<8x32xf32>
    %c0_94 = arith.constant 0 : index
    %c0_95 = arith.constant 0 : index
    %493 = vector.load %arg5[%c0_94, %c0_95] : memref<32x32xf32, #tpu.memory_space<vmem>>, vector<32x32xf32>
    %cst_96 = arith.constant dense<0.000000e+00> : vector<8x32xf32>
    %494 = tpu.matmul %492, %493, %cst_96 {dimension_numbers = #tpu.dot_dimension_numbers<[1], [0], [0], [1], [0, 0, 1, 1], [], []>} : vector<8x32xf32>, vector<32x32xf32>, vector<8x32xf32> -> vector<8x32xf32>
    %c0_97 = arith.constant 0 : index
    %c0_98 = arith.constant 0 : index
    %495 = vector.load %arg6[%c0_97, %c0_98] : memref<1x32xf32, #tpu.memory_space<vmem>>, vector<1x32xf32>
    %496 = vector.broadcast %495 : vector<1x32xf32> to vector<8x32xf32>
    %497 = arith.addf %494, %496 : vector<8x32xf32>
    %498 = math.tanh %497 : vector<8x32xf32>
    %c0_99 = arith.constant 0 : index
    %c0_100 = arith.constant 0 : index
    %499 = vector.load %arg7[%c0_99, %c0_100] : memref<1x32xf32, #tpu.memory_space<vmem>>, vector<1x32xf32>
    %500 = vector.broadcast %499 : vector<1x32xf32> to vector<8x32xf32>
    %501 = arith.mulf %498, %500 : vector<8x32xf32>
    %cst_101 = arith.constant dense<0.000000e+00> : vector<8xf32>
    %502 = vector.multi_reduction <add>, %501, %cst_101 [1] : vector<8x32xf32> to vector<8xf32>
    %503 = vector.shape_cast %502 : vector<8xf32> to vector<8x1xf32>
    %cst_102 = arith.constant dense<0xFF800000> : vector<1xf32>
    %504 = vector.multi_reduction <maximumf>, %503, %cst_102 [0] : vector<8x1xf32> to vector<1xf32>
    %505 = vector.shape_cast %504 : vector<1xf32> to vector<1x1xf32>
    %506 = vector.broadcast %505 : vector<1x1xf32> to vector<8x1xf32>
    %507 = arith.subf %503, %506 : vector<8x1xf32>
    %508 = math.exp %507 : vector<8x1xf32>
    %cst_103 = arith.constant dense<0.000000e+00> : vector<1xf32>
    %509 = vector.multi_reduction <add>, %508, %cst_103 [0] : vector<8x1xf32> to vector<1xf32>
    %510 = vector.shape_cast %509 : vector<1xf32> to vector<1x1xf32>
    %511 = tpu.reciprocal %510 {approx = true} : vector<1x1xf32> -> vector<1x1xf32>
    %512 = vector.broadcast %511 : vector<1x1xf32> to vector<8x1xf32>
    %513 = arith.mulf %508, %512 : vector<8x1xf32>
    %c0_104 = arith.constant 0 : index
    %c0_105 = arith.constant 0 : index
    %c0_106 = arith.constant 0 : index
    %514 = vector.load %arg11[%c0_104, %c0_105, %c0_106] : memref<1x8x1xf32, #tpu.memory_space<vmem>>, vector<1x8x1xf32>
    %515 = vector.shape_cast %514 : vector<1x8x1xf32> to vector<8x1xf32>
    %516 = vector.shape_cast %513 : vector<8x1xf32> to vector<1x8x1xf32>
    tpu.vector_store %arg11[%c0_104, %c0_105, %c0_106], %516 {strides = array<i32>} : memref<1x8x1xf32, #tpu.memory_space<vmem>>, vector<1x8x1xf32>,
    %517 = vector.broadcast %513 : vector<8x1xf32> to vector<8x32xf32>
    %518 = arith.mulf %492, %517 : vector<8x32xf32>
    %cst_107 = arith.constant dense<0.000000e+00> : vector<32xf32>
    %519 = vector.multi_reduction <add>, %518, %cst_107 [0] : vector<8x32xf32> to vector<32xf32>
    %520 = vector.shape_cast %519 : vector<32xf32> to vector<1x32xf32>
    %c0_108 = arith.constant 0 : index
    %c0_109 = arith.constant 0 : index
    %521 = vector.load %arg8[%c0_108, %c0_109] : memref<32x2xf32, #tpu.memory_space<vmem>>, vector<32x2xf32>
    %cst_110 = arith.constant dense<0.000000e+00> : vector<1x2xf32>
    %522 = tpu.matmul %520, %521, %cst_110 {dimension_numbers = #tpu.dot_dimension_numbers<[1], [0], [0], [1], [0, 0, 1, 1], [], []>} : vector<1x32xf32>, vector<32x2xf32>, vector<1x2xf32> -> vector<1x2xf32>
    %c0_111 = arith.constant 0 : index
    %c0_112 = arith.constant 0 : index
    %523 = vector.load %arg9[%c0_111, %c0_112] : memref<1x2xf32, #tpu.memory_space<vmem>>, vector<1x2xf32>
    %524 = arith.addf %522, %523 : vector<1x2xf32>
    %c0_113 = arith.constant 0 : index
    %c0_114 = arith.constant 0 : index
    %c0_115 = arith.constant 0 : index
    %525 = vector.load %arg10[%c0_113, %c0_114, %c0_115] : memref<1x1x2xf32, #tpu.memory_space<vmem>>, vector<1x1x2xf32>
    %526 = vector.shape_cast %525 : vector<1x1x2xf32> to vector<1x2xf32>
    %527 = vector.shape_cast %524 : vector<1x2xf32> to vector<1x1x2xf32>
    tpu.vector_store %arg10[%c0_113, %c0_114, %c0_115], %527 {strides = array<i32>} : memref<1x1x2xf32, #tpu.memory_space<vmem>>, vector<1x1x2xf32>,
    return
  }
  func.func @transform_0(%arg0: i32) -> (i32, i32, i32) {
    %c0_i32 = arith.constant 0 : i32
    %c0_i32_0 = arith.constant 0 : i32
    %c0_i32_1 = arith.constant 0 : i32
    return %arg0, %c0_i32, %c0_i32_0 : i32, i32, i32
  }
  func.func @transform_1(%arg0: i32) -> (i32, i32) {
    %c0_i32 = arith.constant 0 : i32
    %c0_i32_0 = arith.constant 0 : i32
    %c0_i32_1 = arith.constant 0 : i32
    return %c0_i32, %c0_i32_0 : i32, i32
  }
  func.func @transform_2(%arg0: i32) -> (i32, i32) {
    %c0_i32 = arith.constant 0 : i32
    %c0_i32_0 = arith.constant 0 : i32
    %c0_i32_1 = arith.constant 0 : i32
    return %c0_i32, %c0_i32_0 : i32, i32
  }
  func.func @transform_3(%arg0: i32) -> (i32, i32) {
    %c0_i32 = arith.constant 0 : i32
    %c0_i32_0 = arith.constant 0 : i32
    %c0_i32_1 = arith.constant 0 : i32
    return %c0_i32, %c0_i32_0 : i32, i32
  }
  func.func @transform_4(%arg0: i32) -> (i32, i32) {
    %c0_i32 = arith.constant 0 : i32
    %c0_i32_0 = arith.constant 0 : i32
    %c0_i32_1 = arith.constant 0 : i32
    return %c0_i32, %c0_i32_0 : i32, i32
  }
  func.func @transform_5(%arg0: i32) -> (i32, i32) {
    %c0_i32 = arith.constant 0 : i32
    %c0_i32_0 = arith.constant 0 : i32
    %c0_i32_1 = arith.constant 0 : i32
    return %c0_i32, %c0_i32_0 : i32, i32
  }
  func.func @transform_6(%arg0: i32) -> (i32, i32) {
    %c0_i32 = arith.constant 0 : i32
    %c0_i32_0 = arith.constant 0 : i32
    %c0_i32_1 = arith.constant 0 : i32
    return %c0_i32, %c0_i32_0 : i32, i32
  }
  func.func @transform_7(%arg0: i32) -> (i32, i32) {
    %c0_i32 = arith.constant 0 : i32
    %c0_i32_0 = arith.constant 0 : i32
    %c0_i32_1 = arith.constant 0 : i32
    return %c0_i32, %c0_i32_0 : i32, i32
  }
  func.func @transform_8(%arg0: i32) -> (i32, i32) {
    %c0_i32 = arith.constant 0 : i32
    %c0_i32_0 = arith.constant 0 : i32
    %c0_i32_1 = arith.constant 0 : i32
    return %c0_i32, %c0_i32_0 : i32, i32
  }
  func.func @transform_9(%arg0: i32) -> (i32, i32, i32) {
    %c0_i32 = arith.constant 0 : i32
    %c0_i32_0 = arith.constant 0 : i32
    %c0_i32_1 = arith.constant 0 : i32
    return %arg0, %c0_i32, %c0_i32_0 : i32, i32, i32
  }
  func.func @transform_10(%arg0: i32) -> (i32, i32, i32) {
    %c0_i32 = arith.constant 0 : i32
    %c0_i32_0 = arith.constant 0 : i32
    %c0_i32_1 = arith.constant 0 : i32
    return %arg0, %c0_i32, %c0_i32_0 : i32, i32, i32
  }
}

</mosaic_0001>

<llo_original>
// kernel: tpu_custom_call.1
$region0: #{tpu_custom_call.1}
  #allocation0 [shape = 'u32[]', space=smem, size = 0x4, offset = 0x4, fixed_abs, tag = 'smem constant byte address 0x4 - core index']
  #allocation1 [shape = 'u32[144,128]{1,0:T(1,128)}', space=vmem, size = 0x12000, scoped, tag = 'internal scratch']
  #allocation2 [shape = 'f32[8,32]{1,0:T(8,128)}', space=vmem, size = 0x1000, scoped, tag = 'scratch operand']
  %s0 = inlined_call_operand.vmem [shape: f32[4,8,32], index: 0, kind: input, shape index: {}]
  %s1 = inlined_call_operand.hbm [shape: f32[32,128], index: 1, kind: input, shape index: {}]
  %s2 = inlined_call_operand.hbm [shape: f32[32,128], index: 2, kind: input, shape index: {}]
  %s3 = inlined_call_operand.vmem [shape: f32[1,128], index: 3, kind: input, shape index: {}]
  %s4 = inlined_call_operand.hbm [shape: f32[32,32], index: 4, kind: input, shape index: {}]
  %s5 = inlined_call_operand.vmem [shape: f32[1,32], index: 5, kind: input, shape index: {}]
  %s6 = inlined_call_operand.vmem [shape: f32[1,32], index: 6, kind: input, shape index: {}]
  %s7 = inlined_call_operand.vmem [shape: f32[32,2], index: 7, kind: input, shape index: {}]
  %s8 = inlined_call_operand.vmem [shape: f32[1,2], index: 8, kind: input, shape index: {}]
  %s9 = inlined_call_operand.vmem [shape: f32[4,1,2], index: 9, kind: output, shape index: {0}]
  %s10 = inlined_call_operand.vmem [shape: f32[4,8,1], index: 10, kind: output, shape index: {1}]
  %11 = xla_tuple %s9, %s10
  %s12 = sld [smem:[#allocation0]]
  $region89: #{tpu_custom_call.1} parent=0
    _
  %s14 = ssub.s32 1, %s12
  %s15 = scalar_select 0, %s14, %s12
  $region1: #{tpu_custom_call.1} parent=0
    #allocation3 [shape = 'u8[16384]{0}', space=vmem, size = 0x4000, scoped, tag = 'input window, operand 1, single buffered']
    #allocation4 [shape = 's32[2]{0}', space=sflag, size = 0x8, scoped, tag = 'scoped memory for tpu_custom_call.1']
    #allocation5 [shape = 'u8[16384]{0}', space=vmem, size = 0x4000, scoped, tag = 'input window, operand 2, single buffered']
    #allocation6 [shape = 's32[1]{0}', space=sflag, size = 0x4, scoped, tag = 'scoped memory for tpu_custom_call.1']
    #allocation7 [shape = 'u8[16384]{0}', space=vmem, size = 0x4000, scoped, tag = 'input window, operand 4, single buffered']
    %16 = vsyncpa [#allocation4], 0
    %17 = vsyncpa [#allocation6], 0
    loop: start=0, step=1, limit=6
    $region2: #{tpu_custom_call.1} parent=1 // loop_pre_header
      _
    $region3: #{tpu_custom_call.1} parent=1 // loop_header
      %s19 = sphi 0, %s23
      %p20 = scmp.ge.s32.totalorder %s19, 6
      %s29 = sphi 0, %s31
      %s32 = sphi 0, %s29
      %s33 = sphi 0, %s32
      %s49 = sphi 0, %s33
      %s53 = sphi 0, %s53
      %s55 = sphi 0, %s53
      %s56 = sphi 0, %s55
      %s70 = sphi 0, %s56
      %s74 = sphi 0, %s74
      %s76 = sphi 0, %s74
      %s77 = sphi 0, %s76
      %s91 = sphi 0, %s77
      %s95 = sphi 0, %s95
      %s97 = sphi 0, %s95
      %s98 = sphi 0, %s97
      %s112 = sphi 0, %s98
      %s116 = sphi 0, %s116
      %s118 = sphi 0, %s116
      %s119 = sphi 0, %s118
      %s133 = sphi 0, %s119
      %s137 = sphi 0, %s137
      %s139 = sphi 0, %s137
      %s140 = sphi 0, %s139
      %s154 = sphi 0, %s140
      %s158 = sphi 0, %s158
      %s160 = sphi 0, %s158
      %s161 = sphi 0, %s160
      %s175 = sphi 0, %s161
      %s179 = sphi 0, %s179
      %s181 = sphi 0, %s179
      %s182 = sphi 0, %s181
      %s196 = sphi 0, %s182
      %s200 = sphi 0, %s200
      %s202 = sphi 0, %s200
      %s203 = sphi 0, %s202
      %s217 = sphi 0, %s203
      %s223 = sphi 0, %s225
      %s226 = sphi 0, %s223
      %s227 = sphi 0, %s226
      %s243 = sphi 0, %s227
      %s249 = sphi 0, %s251
      %s252 = sphi 0, %s249
      %s253 = sphi 0, %s252
      %s269 = sphi 0, %s253
    $region4: #{tpu_custom_call.1} parent=1 // loop_header_branch
      %22 = sbr.rel (%p20) target = $region8
    $region5: #{tpu_custom_call.1} parent=1 // loop_body
      %s24 = ssub.s32 %s19, 1
      %s25 = ssub.s32 %s19, 2
      %s26 = sadd.s32 %s19, 1
      %s27 = ssub.s32 %s19, %s26
      %p28 = scmp.eq.s32.totalorder %s27, 0
      %s30 = sadd.s32 %s29, 1
      %s31 = scalar_select %p28, %s29, %s30
      %p34 = pneg %p28
      %p35 = scmp.eq.s32.totalorder %s19, 3
      %p36 = por %p34, %p35
      %p37 = scmp.ne.s32.totalorder %s29, %s32
      %p38 = scmp.eq.s32.totalorder %s19, 0
      %p39 = por %p37, %p38
      %p40 = scmp.ne.s32.totalorder %s29, %s32
      %p41 = scmp.eq.s32.totalorder %s24, 3
      %p42 = por %p40, %p41
      %p43 = scmp.ne.s32.totalorder %s32, %s33
      %p44 = scmp.eq.s32.totalorder %s24, 0
      %p45 = por %p43, %p44
      %p46 = scmp.ne.s32.totalorder %s32, %s33
      %p47 = scmp.eq.s32.totalorder %s25, 3
      %p48 = por %p46, %p47
      %p50 = scmp.ne.s32.totalorder %s33, %s49
      %p51 = scmp.eq.s32.totalorder %s25, 0
      %p52 = por %p50, %p51
      %s54 = sadd.s32 %s53, 1
      %p57 = scmp.eq.s32.totalorder %s19, 3
      %p58 = scmp.ne.s32.totalorder %s53, %s55
      %p59 = scmp.eq.s32.totalorder %s19, 0
      %p60 = por %p58, %p59
      %p61 = scmp.ne.s32.totalorder %s53, %s55
      %p62 = scmp.eq.s32.totalorder %s24, 3
      %p63 = por %p61, %p62
      %p64 = scmp.ne.s32.totalorder %s55, %s56
      %p65 = scmp.eq.s32.totalorder %s24, 0
      %p66 = por %p64, %p65
      %p67 = scmp.ne.s32.totalorder %s55, %s56
      %p68 = scmp.eq.s32.totalorder %s25, 3
      %p69 = por %p67, %p68
      %p71 = scmp.ne.s32.totalorder %s56, %s70
      %p72 = scmp.eq.s32.totalorder %s25, 0
      %p73 = por %p71, %p72
      %s75 = sadd.s32 %s74, 1
      %p78 = scmp.eq.s32.totalorder %s19, 3
      %p79 = scmp.ne.s32.totalorder %s74, %s76
      %p80 = scmp.eq.s32.totalorder %s19, 0
      %p81 = por %p79, %p80
      %p82 = scmp.ne.s32.totalorder %s74, %s76
      %p83 = scmp.eq.s32.totalorder %s24, 3
      %p84 = por %p82, %p83
      %p85 = scmp.ne.s32.totalorder %s76, %s77
      %p86 = scmp.eq.s32.totalorder %s24, 0
      %p87 = por %p85, %p86
      %p88 = scmp.ne.s32.totalorder %s76, %s77
      %p89 = scmp.eq.s32.totalorder %s25, 3
      %p90 = por %p88, %p89
      %p92 = scmp.ne.s32.totalorder %s77, %s91
      %p93 = scmp.eq.s32.totalorder %s25, 0
      %p94 = por %p92, %p93
      %s96 = sadd.s32 %s95, 1
      %p99 = scmp.eq.s32.totalorder %s19, 3
      %p100 = scmp.ne.s32.totalorder %s95, %s97
      %p101 = scmp.eq.s32.totalorder %s19, 0
      %p102 = por %p100, %p101
      %p103 = scmp.ne.s32.totalorder %s95, %s97
      %p104 = scmp.eq.s32.totalorder %s24, 3
      %p105 = por %p103, %p104
      %p106 = scmp.ne.s32.totalorder %s97, %s98
      %p107 = scmp.eq.s32.totalorder %s24, 0
      %p108 = por %p106, %p107
      %p109 = scmp.ne.s32.totalorder %s97, %s98
      %p110 = scmp.eq.s32.totalorder %s25, 3
      %p111 = por %p109, %p110
      %p113 = scmp.ne.s32.totalorder %s98, %s112
      %p114 = scmp.eq.s32.totalorder %s25, 0
      %p115 = por %p113, %p114
      %s117 = sadd.s32 %s116, 1
      %p120 = scmp.eq.s32.totalorder %s19, 3
      %p121 = scmp.ne.s32.totalorder %s116, %s118
      %p122 = scmp.eq.s32.totalorder %s19, 0
      %p123 = por %p121, %p122
      %p124 = scmp.ne.s32.totalorder %s116, %s118
      %p125 = scmp.eq.s32.totalorder %s24, 3
      %p126 = por %p124, %p125
      %p127 = scmp.ne.s32.totalorder %s118, %s119
      %p128 = scmp.eq.s32.totalorder %s24, 0
      %p129 = por %p127, %p128
      %p130 = scmp.ne.s32.totalorder %s118, %s119
      %p131 = scmp.eq.s32.totalorder %s25, 3
      %p132 = por %p130, %p131
      %p134 = scmp.ne.s32.totalorder %s119, %s133
      %p135 = scmp.eq.s32.totalorder %s25, 0
      %p136 = por %p134, %p135
      %s138 = sadd.s32 %s137, 1
      %p141 = scmp.eq.s32.totalorder %s19, 3
      %p142 = scmp.ne.s32.totalorder %s137, %s139
      %p143 = scmp.eq.s32.totalorder %s19, 0
      %p144 = por %p142, %p143
      %p145 = scmp.ne.s32.totalorder %s137, %s139
      %p146 = scmp.eq.s32.totalorder %s24, 3
      %p147 = por %p145, %p146
      %p148 = scmp.ne.s32.totalorder %s139, %s140
      %p149 = scmp.eq.s32.totalorder %s24, 0
      %p150 = por %p148, %p149
      %p151 = scmp.ne.s32.totalorder %s139, %s140
      %p152 = scmp.eq.s32.totalorder %s25, 3
      %p153 = por %p151, %p152
      %p155 = scmp.ne.s32.totalorder %s140, %s154
      %p156 = scmp.eq.s32.totalorder %s25, 0
      %p157 = por %p155, %p156
      %s159 = sadd.s32 %s158, 1
      %p162 = scmp.eq.s32.totalorder %s19, 3
      %p163 = scmp.ne.s32.totalorder %s158, %s160
      %p164 = scmp.eq.s32.totalorder %s19, 0
      %p165 = por %p163, %p164
      %p166 = scmp.ne.s32.totalorder %s158, %s160
      %p167 = scmp.eq.s32.totalorder %s24, 3
      %p168 = por %p166, %p167
      %p169 = scmp.ne.s32.totalorder %s160, %s161
      %p170 = scmp.eq.s32.totalorder %s24, 0
      %p171 = por %p169, %p170
      %p172 = scmp.ne.s32.totalorder %s160, %s161
      %p173 = scmp.eq.s32.totalorder %s25, 3
      %p174 = por %p172, %p173
      %p176 = scmp.ne.s32.totalorder %s161, %s175
      %p177 = scmp.eq.s32.totalorder %s25, 0
      %p178 = por %p176, %p177
      %s180 = sadd.s32 %s179, 1
      %p183 = scmp.eq.s32.totalorder %s19, 3
      %p184 = scmp.ne.s32.totalorder %s179, %s181
      %p185 = scmp.eq.s32.totalorder %s19, 0
      %p186 = por %p184, %p185
      %p187 = scmp.ne.s32.totalorder %s179, %s181
      %p188 = scmp.eq.s32.totalorder %s24, 3
      %p189 = por %p187, %p188
      %p190 = scmp.ne.s32.totalorder %s181, %s182
      %p191 = scmp.eq.s32.totalorder %s24, 0
      %p192 = por %p190, %p191
      %p193 = scmp.ne.s32.totalorder %s181, %s182
      %p194 = scmp.eq.s32.totalorder %s25, 3
      %p195 = por %p193, %p194
      %p197 = scmp.ne.s32.totalorder %s182, %s196
      %p198 = scmp.eq.s32.totalorder %s25, 0
      %p199 = por %p197, %p198
      %s201 = sadd.s32 %s200, 1
      %p204 = scmp.eq.s32.totalorder %s19, 3
      %p205 = scmp.ne.s32.totalorder %s200, %s202
      %p206 = scmp.eq.s32.totalorder %s19, 0
      %p207 = por %p205, %p206
      %p208 = scmp.ne.s32.totalorder %s200, %s202
      %p209 = scmp.eq.s32.totalorder %s24, 3
      %p210 = por %p208, %p209
      %p211 = scmp.ne.s32.totalorder %s202, %s203
      %p212 = scmp.eq.s32.totalorder %s24, 0
      %p213 = por %p211, %p212
      %p214 = scmp.ne.s32.totalorder %s202, %s203
      %p215 = scmp.eq.s32.totalorder %s25, 3
      %p216 = por %p214, %p215
      %p218 = scmp.ne.s32.totalorder %s203, %s217
      %p219 = scmp.eq.s32.totalorder %s25, 0
      %p220 = por %p218, %p219
      %s221 = ssub.s32 %s19, %s26
      %p222 = scmp.eq.s32.totalorder %s221, 0
      %s224 = sadd.s32 %s223, 1
      %s225 = scalar_select %p222, %s223, %s224
      %p228 = pneg %p222
      %p229 = scmp.eq.s32.totalorder %s19, 3
      %p230 = por %p228, %p229
      %p231 = scmp.ne.s32.totalorder %s223, %s226
      %p232 = scmp.eq.s32.totalorder %s19, 0
      %p233 = por %p231, %p232
      %p234 = scmp.ne.s32.totalorder %s223, %s226
      %p235 = scmp.eq.s32.totalorder %s24, 3
      %p236 = por %p234, %p235
      %p237 = scmp.ne.s32.totalorder %s226, %s227
      %p238 = scmp.eq.s32.totalorder %s24, 0
      %p239 = por %p237, %p238
      %p240 = scmp.ne.s32.totalorder %s226, %s227
      %p241 = scmp.eq.s32.totalorder %s25, 3
      %p242 = por %p240, %p241
      %p244 = scmp.ne.s32.totalorder %s227, %s243
      %p245 = scmp.eq.s32.totalorder %s25, 0
      %p246 = por %p244, %p245
      %s247 = ssub.s32 %s19, %s26
      %p248 = scmp.eq.s32.totalorder %s247, 0
      %s250 = sadd.s32 %s249, 1
      %s251 = scalar_select %p248, %s249, %s250
      %p254 = pneg %p248
      %p255 = scmp.eq.s32.totalorder %s19, 3
      %p256 = por %p254, %p255
      %p257 = scmp.ne.s32.totalorder %s249, %s252
      %p258 = scmp.eq.s32.totalorder %s19, 0
      %p259 = por %p257, %p258
      %p260 = scmp.ne.s32.totalorder %s249, %s252
      %p261 = scmp.eq.s32.totalorder %s24, 3
      %p262 = por %p260, %p261
      %p263 = scmp.ne.s32.totalorder %s252, %s253
      %p264 = scmp.eq.s32.totalorder %s24, 0
      %p265 = por %p263, %p264
      %p266 = scmp.ne.s32.totalorder %s252, %s253
      %p267 = scmp.eq.s32.totalorder %s25, 3
      %p268 = por %p266, %p267
      %p270 = scmp.ne.s32.totalorder %s253, %s269
      %p271 = scmp.eq.s32.totalorder %s25, 0
      %p272 = por %p270, %p271
      %p273 = scmp.le.s32.totalorder 1, %s19
      %p274 = scmp.lt.s32.totalorder %s19, 5
      %p275 = pnand %p273, %p274
      %p276 = pneg %p275
      // Predicated region
      $region9: #{tpu_custom_call.1} parent=5 // pred_check
        _
      $region10: #{tpu_custom_call.1} parent=5 // pred_check_branch
        %278 = sbr.rel (%p275) target = $region12
      $region11: #{tpu_custom_call.1} parent=5 // pred_region
        %s279 = ssub.s32 %s19, 1
        // Predicated region
        $region13: #{tpu_custom_call.1} parent=11 // pred_check
          %p280 = pneg %p66
        $region14: #{tpu_custom_call.1} parent=11 // pred_check_branch
          %282 = sbr.rel (%p280) target = $region16
        $region15: #{tpu_custom_call.1} parent=11 // pred_region
          %s284 = ssub.s32 512, 512
          %285 = vsyncadd [#allocation4], %s284
          %s286 = sshll.u32 [#allocation3], 4
          %s287 = int_to_ptr.vmem [resolvable:$true] %s286
          %292 = dma.hbm_to_vmem [thread:$0]  %s1, 512, %s287, [#allocation4], 128, 128, 8
        $region16: #{tpu_custom_call.1} parent=11 // pred_fallthru
          _
        // Predicated region
        $region17: #{tpu_custom_call.1} parent=11 // pred_check
          %p293 = pneg %p87
        $region18: #{tpu_custom_call.1} parent=11 // pred_check_branch
          %295 = sbr.rel (%p293) target = $region20
        $region19: #{tpu_custom_call.1} parent=11 // pred_region
          %s297 = ssub.s32 512, 512
          %298 = vsyncadd [#allocation6], %s297
          %s299 = sshll.u32 [#allocation5], 4
          %s300 = int_to_ptr.vmem [resolvable:$true] %s299
          %305 = dma.hbm_to_vmem [thread:$0]  %s2, 512, %s300, [#allocation6], 128, 128, 8
        $region20: #{tpu_custom_call.1} parent=11 // pred_fallthru
          _
        // Predicated region
        $region21: #{tpu_custom_call.1} parent=11 // pred_check
          %p306 = pneg %p108
        $region22: #{tpu_custom_call.1} parent=11 // pred_check_branch
          %308 = sbr.rel (%p306) target = $region24
        $region23: #{tpu_custom_call.1} parent=11 // pred_region
          _
        $region24: #{tpu_custom_call.1} parent=11 // pred_fallthru
          _
        // Predicated region
        $region25: #{tpu_custom_call.1} parent=11 // pred_check
          %p309 = pneg %p129
        $region26: #{tpu_custom_call.1} parent=11 // pred_check_branch
          %311 = sbr.rel (%p309) target = $region28
        $region27: #{tpu_custom_call.1} parent=11 // pred_region
          %s313 = ssub.s32 512, 512
          %314 = vsyncadd [#allocation6], %s313
          %s315 = sshll.u32 [#allocation7], 4
          %s316 = int_to_ptr.vmem [resolvable:$true] %s315
          %321 = dma.hbm_to_vmem [thread:$0]  %s4, 512, %s316, [#allocation6], 128, 128, 8
        $region28: #{tpu_custom_call.1} parent=11 // pred_fallthru
          _
        // Predicated region
        $region29: #{tpu_custom_call.1} parent=11 // pred_check
          %p322 = pneg %p150
        $region30: #{tpu_custom_call.1} parent=11 // pred_check_branch
          %324 = sbr.rel (%p322) target = $region32
        $region31: #{tpu_custom_call.1} parent=11 // pred_region
          _
        $region32: #{tpu_custom_call.1} parent=11 // pred_fallthru
          _
        // Predicated region
        $region33: #{tpu_custom_call.1} parent=11 // pred_check
          %p325 = pneg %p171
        $region34: #{tpu_custom_call.1} parent=11 // pred_check_branch
          %327 = sbr.rel (%p325) target = $region36
        $region35: #{tpu_custom_call.1} parent=11 // pred_region
          _
        $region36: #{tpu_custom_call.1} parent=11 // pred_fallthru
          _
        // Predicated region
        $region37: #{tpu_custom_call.1} parent=11 // pred_check
          %p328 = pneg %p192
        $region38: #{tpu_custom_call.1} parent=11 // pred_check_branch
          %330 = sbr.rel (%p328) target = $region40
        $region39: #{tpu_custom_call.1} parent=11 // pred_region
          _
        $region40: #{tpu_custom_call.1} parent=11 // pred_fallthru
          _
        // Predicated region
        $region41: #{tpu_custom_call.1} parent=11 // pred_check
          %p331 = pneg %p213
        $region42: #{tpu_custom_call.1} parent=11 // pred_check_branch
          %333 = sbr.rel (%p331) target = $region44
        $region43: #{tpu_custom_call.1} parent=11 // pred_region
          _
        $region44: #{tpu_custom_call.1} parent=11 // pred_fallthru
          _
      $region12: #{tpu_custom_call.1} parent=5 // pred_fallthru
        _
      %p334 = scmp.lt.s32.totalorder %s19, 4
      // Predicated region
      $region45: #{tpu_custom_call.1} parent=5 // pred_check
        %p335 = pneg %p334
      $region46: #{tpu_custom_call.1} parent=5 // pred_check_branch
        %337 = sbr.rel (%p335) target = $region48
      $region47: #{tpu_custom_call.1} parent=5 // pred_region
        // Predicated region
        $region49: #{tpu_custom_call.1} parent=47 // pred_check
          %p338 = pneg %p39
        $region50: #{tpu_custom_call.1} parent=47 // pred_check_branch
          %340 = sbr.rel (%p338) target = $region52
        $region51: #{tpu_custom_call.1} parent=47 // pred_region
          %p341 = scmp.lt.s32.totalorder %s19, 3
          %s342 = scalar_select %p341, %s19, 3
          %s343 = smul.addr %s342, 8
          %s344 = scalar_lea.vmem %s0, %s343
        $region52: #{tpu_custom_call.1} parent=47 // pred_fallthru
          _
      $region48: #{tpu_custom_call.1} parent=5 // pred_fallthru
        _
      %p345 = scmp.le.s32.totalorder 1, %s19
      %p346 = scmp.lt.s32.totalorder %s19, 5
      %p347 = pnand %p345, %p346
      %p348 = pneg %p347
      // Predicated region
      $region53: #{tpu_custom_call.1} parent=5 // pred_check
        _
      $region54: #{tpu_custom_call.1} parent=5 // pred_check_branch
        %350 = sbr.rel (%p347) target = $region56
      $region55: #{tpu_custom_call.1} parent=5 // pred_region
        %s351 = ssub.s32 %s19, 1
        // Predicated region
        $region57: #{tpu_custom_call.1} parent=55 // pred_check
          %p352 = pneg %p66
        $region58: #{tpu_custom_call.1} parent=55 // pred_check_branch
          %354 = sbr.rel (%p352) target = $region60
        $region59: #{tpu_custom_call.1} parent=55 // pred_region
          %355 = dma.done [#allocation4], 512
        $region60: #{tpu_custom_call.1} parent=55 // pred_fallthru
          _
        // Predicated region
        $region61: #{tpu_custom_call.1} parent=55 // pred_check
          %p356 = pneg %p87
        $region62: #{tpu_custom_call.1} parent=55 // pred_check_branch
          %358 = sbr.rel (%p356) target = $region64
        $region63: #{tpu_custom_call.1} parent=55 // pred_region
          %359 = dma.done [#allocation6], 512
        $region64: #{tpu_custom_call.1} parent=55 // pred_fallthru
          _
        // Predicated region
        $region65: #{tpu_custom_call.1} parent=55 // pred_check
          %p360 = pneg %p129
        $region66: #{tpu_custom_call.1} parent=55 // pred_check_branch
          %362 = sbr.rel (%p360) target = $region68
        $region67: #{tpu_custom_call.1} parent=55 // pred_region
          %363 = dma.done [#allocation6], 512
        $region68: #{tpu_custom_call.1} parent=55 // pred_fallthru
          _
        %p364 = scmp.lt.s32.totalorder %s24, 3
        %s365 = scalar_select %p364, %s24, 3
        %s366 = smul.addr %s365, 8
        %s367 = scalar_lea.vmem %s0, %s366
        %p368 = pneg %p45
        %p369 = pneg %p42
        %p370 = pneg %p66
        %p371 = pneg %p63
        %p372 = pneg %p87
        %p373 = pneg %p84
        %p374 = pneg %p108
        %p375 = pneg %p105
        %p376 = pneg %p129
        %p377 = pneg %p126
        %p378 = pneg %p150
        %p379 = pneg %p147
        %p380 = pneg %p171
        %p381 = pneg %p168
        %p382 = pneg %p192
        %p383 = pneg %p189
        %p384 = pneg %p213
        %p385 = pneg %p210
        %p386 = pneg %p239
        %p387 = pneg %p236
        %p388 = scmp.lt.s32.totalorder %s24, 3
        %s389 = scalar_select %p388, %s24, 3
        %s390 = scalar_lea.vmem %s9, %s389
        %p391 = pneg %p265
        %p392 = pneg %p262
        %p393 = scmp.lt.s32.totalorder %s24, 3
        %s394 = scalar_select %p393, %s24, 3
        %s395 = smul.addr %s394, 8
        %s396 = scalar_lea.vmem %s10, %s395
        %p397 = scmp.lt.s32.totalorder %s24, 3
        %s398 = scalar_select %p397, %s24, 3
        %s399 = smul.addr %s398, 8
        %s400 = scalar_lea.vmem %s0, %s399
        %p401 = scmp.lt.s32.totalorder %s24, 3
        %s402 = scalar_select %p401, %s24, 3
        %s403 = scalar_lea.vmem %s9, %s402
        %p404 = scmp.lt.s32.totalorder %s24, 3
        %s405 = scalar_select %p404, %s24, 3
        %s406 = smul.addr %s405, 8
        %s407 = scalar_lea.vmem %s10, %s406
        %v408 = vld [vmem:[%s400] sm:$0xff]
        %v409 = vld [vmem:[#allocation3] sm:$0xff]
        %v410 = vld [vmem:[#allocation3 + $0x8] sm:$0xff]
        %v411 = vld [vmem:[#allocation3 + $0x10] sm:$0xff]
        %v412 = vld [vmem:[#allocation3 + $0x18] sm:$0xff]
        %v413 = vld [vmem:[%s3] sm:$0x1]
        %v415 = vlaneseq
        %v416 = vshrl.u32 %v415, 7
        %v417 = vsub.s32 0, %v416
        %v418 = vrot.slane %v413, %v417
        %vm420 = vcmask 261120
        %v422 = vsel %vm420, %v408, 0
        %424 = vmatprep.subr.mxu0 0.0
        %425 = vmatpush1.msra.mxu0 %v409
        %426 = vmatprep.subr.mxu0 0.0
        %427 = vmatpush1.msra.mxu0 %v410
        %428 = vmatprep.subr.mxu0 0.0
        %429 = vmatpush1.msra.mxu0 %v411
        %430 = vmatprep.subr.mxu0 0.0
        %431 = vmatpush1.msra.mxu0 %v412
        %432 = vmatprep.subr.mxu0 0.0
        %433 = vmatpush1.msra.mxu0 0.0
        %434 = vmatprep.subr.mxu0 0.0
        %435 = vmatpush1.msra.mxu0 0.0
        %436 = vmatprep.subr.mxu0 0.0
        %437 = vmatpush1.msra.mxu0 0.0
        %438 = vmatprep.subr.mxu0 0.0
        %439 = vmatpush1.msra.mxu0 0.0
        %440 = vmatprep.subr.mxu0 0.0
        %441 = vmatpush1.msra.mxu0 0.0
        %442 = vmatprep.subr.mxu0 0.0
        %443 = vmatpush1.msra.mxu0 0.0
        %444 = vmatprep.subr.mxu0 0.0
        %445 = vmatpush1.msra.mxu0 0.0
        %446 = vmatprep.subr.mxu0 0.0
        %447 = vmatpush1.msra.mxu0 0.0
        %448 = vmatprep.subr.mxu0 0.0
        %449 = vmatpush1.msra.mxu0 0.0
        %450 = vmatprep.subr.mxu0 0.0
        %451 = vmatpush1.msra.mxu0 0.0
        %452 = vmatprep.subr.mxu0 0.0
        %453 = vmatpush1.msra.mxu0 0.0
        %454 = vmatprep.subr.mxu0 0.0
        %455 = vmatpush1.msra.mxu0 0.0
        %456 = vmatprep.subr.mxu0 0.0
        %457 = vmatpush1.msra.mxu0 0.0
        %458 = vmatprep.subr.mxu0 0.0
        %459 = vmatpush1.msra.mxu0 0.0
        %460 = vmatprep.subr.mxu0 0.0
        %461 = vmatpush1.msra.mxu0 0.0
        %462 = vmatprep.subr.mxu0 0.0
        %463 = vmatpush1.msra.mxu0 0.0
        %464 = vmatprep.subr.mxu0 0.0
        %465 = vmatpush1.msra.mxu0 0.0
        %466 = vmatprep.subr.mxu0 0.0
        %467 = vmatpush1.msra.mxu0 0.0
        %468 = vmatprep.subr.mxu0 0.0
        %469 = vmatpush1.msra.mxu0 0.0
        %470 = vmatprep.subr.mxu0 0.0
        %471 = vmatpush1.msra.mxu0 0.0
        %472 = vmatprep.subr.mxu0 0.0
        %473 = vmatpush1.msra.mxu0 0.0
        %474 = vmatprep.subr.mxu0 0.0
        %475 = vmatpush1.msra.mxu0 0.0
        %476 = vmatprep.subr.mxu0 0.0
        %477 = vmatpush1.msra.mxu0 0.0
        %478 = vmatprep.subr.mxu0 0.0
        %479 = vmatpush1.msra.mxu0 0.0
        %480 = vmatprep.subr.mxu0 0.0
        %481 = vmatpush1.msra.mxu0 0.0
        %482 = vmatprep.subr.mxu0 0.0
        %483 = vmatpush1.msra.mxu0 0.0
        %484 = vmatprep.subr.mxu0 0.0
        %485 = vmatpush1.msra.mxu0 0.0
        %486 = vmatprep.subr.mxu0 0.0
        %487 = vmatpush1.msra.mxu0 0.0
        %488 = vmatprep.mubr.f32.mxu0 0.0
        %489 = vmatmul.mubr.f32.gmra.mrb[0].mxu0 %v422
        %v490 = vpop.f32.mrb[0].mxu0
        %v491 = vadd.f32 %v418, %v490
        %v492 = vpop.f32.mrb[0].mxu0
        %493 = vdwg.mxu0
        %v494 = vld [vmem:[#allocation5] sm:$0xff]
        %v495 = vld [vmem:[#allocation5 + $0x8] sm:$0xff]
        %v496 = vld [vmem:[#allocation5 + $0x10] sm:$0xff]
        %v497 = vld [vmem:[#allocation5 + $0x18] sm:$0xff]
        %v499 = vsel %vm420, 0.0, 0
        %501 = vmatprep.subr.mxu0 0.0
        %502 = vmatpush1.msra.mxu0 %v494
        %503 = vmatprep.subr.mxu0 0.0
        %504 = vmatpush1.msra.mxu0 %v495
        %505 = vmatprep.subr.mxu0 0.0
        %506 = vmatpush1.msra.mxu0 %v496
        %507 = vmatprep.subr.mxu0 0.0
        %508 = vmatpush1.msra.mxu0 %v497
        %509 = vmatprep.subr.mxu0 0.0
        %510 = vmatpush1.msra.mxu0 0.0
        %511 = vmatprep.subr.mxu0 0.0
        %512 = vmatpush1.msra.mxu0 0.0
        %513 = vmatprep.subr.mxu0 0.0
        %514 = vmatpush1.msra.mxu0 0.0
        %515 = vmatprep.subr.mxu0 0.0
        %516 = vmatpush1.msra.mxu0 0.0
        %517 = vmatprep.subr.mxu0 0.0
        %518 = vmatpush1.msra.mxu0 0.0
        %519 = vmatprep.subr.mxu0 0.0
        %520 = vmatpush1.msra.mxu0 0.0
        %521 = vmatprep.subr.mxu0 0.0
        %522 = vmatpush1.msra.mxu0 0.0
        %523 = vmatprep.subr.mxu0 0.0
        %524 = vmatpush1.msra.mxu0 0.0
        %525 = vmatprep.subr.mxu0 0.0
        %526 = vmatpush1.msra.mxu0 0.0
        %527 = vmatprep.subr.mxu0 0.0
        %528 = vmatpush1.msra.mxu0 0.0
        %529 = vmatprep.subr.mxu0 0.0
        %530 = vmatpush1.msra.mxu0 0.0
        %531 = vmatprep.subr.mxu0 0.0
        %532 = vmatpush1.msra.mxu0 0.0
        %533 = vmatprep.subr.mxu0 0.0
        %534 = vmatpush1.msra.mxu0 0.0
        %535 = vmatprep.subr.mxu0 0.0
        %536 = vmatpush1.msra.mxu0 0.0
        %537 = vmatprep.subr.mxu0 0.0
        %538 = vmatpush1.msra.mxu0 0.0
        %539 = vmatprep.subr.mxu0 0.0
        %540 = vmatpush1.msra.mxu0 0.0
        %541 = vmatprep.subr.mxu0 0.0
        %542 = vmatpush1.msra.mxu0 0.0
        %543 = vmatprep.subr.mxu0 0.0
        %544 = vmatpush1.msra.mxu0 0.0
        %545 = vmatprep.subr.mxu0 0.0
        %546 = vmatpush1.msra.mxu0 0.0
        %547 = vmatprep.subr.mxu0 0.0
        %548 = vmatpush1.msra.mxu0 0.0
        %549 = vmatprep.subr.mxu0 0.0
        %550 = vmatpush1.msra.mxu0 0.0
        %551 = vmatprep.subr.mxu0 0.0
        %552 = vmatpush1.msra.mxu0 0.0
        %553 = vmatprep.subr.mxu0 0.0
        %554 = vmatpush1.msra.mxu0 0.0
        %555 = vmatprep.subr.mxu0 0.0
        %556 = vmatpush1.msra.mxu0 0.0
        %557 = vmatprep.subr.mxu0 0.0
        %558 = vmatpush1.msra.mxu0 0.0
        %559 = vmatprep.subr.mxu0 0.0
        %560 = vmatpush1.msra.mxu0 0.0
        %561 = vmatprep.subr.mxu0 0.0
        %562 = vmatpush1.msra.mxu0 0.0
        %563 = vmatprep.subr.mxu0 0.0
        %564 = vmatpush1.msra.mxu0 0.0
        %565 = vmatprep.mubr.f32.mxu0 0.0
        %566 = vmatmul.mubr.f32.gmra.mrb[0].mxu0 %v499
        %v567 = vpop.f32.mrb[0].mxu0
        %v568 = vadd.f32 0.0, %v567
        %v569 = vpop.f32.mrb[0].mxu0
        %570 = vdwg.mxu0
        %v571 = vadd.f32 %v491, %v568
        %v573 = vrot.slane %v568, 1
        %v575 = vadd.f32 %v491, %v573
        %v576 = vxor.u32 %v571, 2147483648
        %v577 = vmul.f32 %v576, 1.442695
        %v578 = vpow.pop %v577
        %v579 = vadd.f32 %v578, 1.0
        %v580 = vrcp.pop %v579
        %v581 = vmul.f32 1.0, %v580
        %v582 = vtanh.pop %v571
        %v583 = vmul.f32 %v581, 0.0
        %585 = vrot.lane.b32.xlu0 %v582, 96
        %v586 = vpop.permute.xlu0 %585
        %v588 = vmul.f32 %v581, %v586
        %590 = vrot.lane.b32.xlu0 %v588, 16
        %v591 = vpop.permute.xlu0 %590
        %v593 = vadd.f32 %v583, %v591
        %v594 = vtanh.pop %v593
        %596 = vrot.lane.b32.xlu0 %v594, 32
        %v597 = vpop.permute.xlu0 %596
        %v599 = vmul.f32 %v581, %v597
        %v600 = vxor.u32 %v575, 2147483648
        %v601 = vmul.f32 %v600, 1.442695
        %v602 = vpow.pop %v601
        %v603 = vadd.f32 %v602, 1.0
        %v604 = vrcp.pop %v603
        %v605 = vmul.f32 1.0, %v604
        %v606 = vtanh.pop %v575
        %v607 = vmul.f32 %v605, 0.0
        %609 = vrot.lane.b32.xlu0 %v606, 96
        %v610 = vpop.permute.xlu0 %609
        %v612 = vmul.f32 %v605, %v610
        %614 = vrot.lane.b32.xlu0 %v612, 16
        %v615 = vpop.permute.xlu0 %614
        %v617 = vadd.f32 %v607, %v615
        %v618 = vtanh.pop %v617
        %620 = vrot.lane.b32.xlu0 %v618, 32
        %v621 = vpop.permute.xlu0 %620
        %v623 = vmul.f32 %v605, %v621
        %625 = vrot.lane.b32.xlu0 %v599, 80
        %v626 = vpop.permute.xlu0 %625
        %vm628 = vcmask 122880
        %629 = vst.msk [vmem:[#allocation2] sm:$0x1] %vm628, %v626
        %631 = vrot.lane.b32.xlu0 %v623, 32
        %v632 = vpop.permute.xlu0 %631
        %vm634 = vcmask 261255
        %635 = vst.msk [vmem:[#allocation2] sm:$0x80] %vm634, %v632
        %v636 = vrot.slane %v623, 7
        %637 = vrot.lane.b32.xlu0 %v636, 32
        %v638 = vpop.permute.xlu0 %637
        %vm640 = vcmask 130048
        %v641 = vsel %vm640, %v626, %v638
        %v643 = vsel %vm420, %v641, 0
        %645 = vmatprep.subr.mxu0 0.0
        %646 = vmatpush1.msra.mxu0 %v494
        %647 = vmatprep.subr.mxu0 0.0
        %648 = vmatpush1.msra.mxu0 %v495
        %649 = vmatprep.subr.mxu0 0.0
        %650 = vmatpush1.msra.mxu0 %v496
        %651 = vmatprep.subr.mxu0 0.0
        %652 = vmatpush1.msra.mxu0 %v497
        %653 = vmatprep.subr.mxu0 0.0
        %654 = vmatpush1.msra.mxu0 0.0
        %655 = vmatprep.subr.mxu0 0.0
        %656 = vmatpush1.msra.mxu0 0.0
        %657 = vmatprep.subr.mxu0 0.0
        %658 = vmatpush1.msra.mxu0 0.0
        %659 = vmatprep.subr.mxu0 0.0
        %660 = vmatpush1.msra.mxu0 0.0
        %661 = vmatprep.subr.mxu0 0.0
        %662 = vmatpush1.msra.mxu0 0.0
        %663 = vmatprep.subr.mxu0 0.0
        %664 = vmatpush1.msra.mxu0 0.0
        %665 = vmatprep.subr.mxu0 0.0
        %666 = vmatpush1.msra.mxu0 0.0
        %667 = vmatprep.subr.mxu0 0.0
        %668 = vmatpush1.msra.mxu0 0.0
        %669 = vmatprep.subr.mxu0 0.0
        %670 = vmatpush1.msra.mxu0 0.0
        %671 = vmatprep.subr.mxu0 0.0
        %672 = vmatpush1.msra.mxu0 0.0
        %673 = vmatprep.subr.mxu0 0.0
        %674 = vmatpush1.msra.mxu0 0.0
        %675 = vmatprep.subr.mxu0 0.0
        %676 = vmatpush1.msra.mxu0 0.0
        %677 = vmatprep.subr.mxu0 0.0
        %678 = vmatpush1.msra.mxu0 0.0
        %679 = vmatprep.subr.mxu0 0.0
        %680 = vmatpush1.msra.mxu0 0.0
        %681 = vmatprep.subr.mxu0 0.0
        %682 = vmatpush1.msra.mxu0 0.0
        %683 = vmatprep.subr.mxu0 0.0
        %684 = vmatpush1.msra.mxu0 0.0
        %685 = vmatprep.subr.mxu0 0.0
        %686 = vmatpush1.msra.mxu0 0.0
        %687 = vmatprep.subr.mxu0 0.0
        %688 = vmatpush1.msra.mxu0 0.0
        %689 = vmatprep.subr.mxu0 0.0
        %690 = vmatpush1.msra.mxu0 0.0
        %691 = vmatprep.subr.mxu0 0.0
        %692 = vmatpush1.msra.mxu0 0.0
        %693 = vmatprep.subr.mxu0 0.0
        %694 = vmatpush1.msra.mxu0 0.0
        %695 = vmatprep.subr.mxu0 0.0
        %696 = vmatpush1.msra.mxu0 0.0
        %697 = vmatprep.subr.mxu0 0.0
        %698 = vmatpush1.msra.mxu0 0.0
        %699 = vmatprep.subr.mxu0 0.0
        %700 = vmatpush1.msra.mxu0 0.0
        %701 = vmatprep.subr.mxu0 0.0
        %702 = vmatpush1.msra.mxu0 0.0
        %703 = vmatprep.subr.mxu0 0.0
        %704 = vmatpush1.msra.mxu0 0.0
        %705 = vmatprep.subr.mxu0 0.0
        %706 = vmatpush1.msra.mxu0 0.0
        %707 = vmatprep.subr.mxu0 0.0
        %708 = vmatpush1.msra.mxu0 0.0
        %709 = vmatprep.mubr.f32.mxu0 0.0
        %710 = vmatmul.mubr.f32.gmra.mrb[0].mxu0 %v643
        %v711 = vpop.f32.mrb[0].mxu0
        %v712 = vadd.f32 0.0, %v711
        %v713 = vpop.f32.mrb[0].mxu0
        %714 = vdwg.mxu0
        %v716 = vrot.slane %v712, 7
        %v718 = vadd.f32 %v491, %v716
        %v719 = vrot.slane %v712, 2
        %v721 = vadd.f32 %v491, %v719
        %v722 = vxor.u32 %v718, 2147483648
        %v723 = vmul.f32 %v722, 1.442695
        %v724 = vpow.pop %v723
        %v725 = vadd.f32 %v724, 1.0
        %v726 = vrcp.pop %v725
        %v727 = vmul.f32 1.0, %v726
        %v728 = vtanh.pop %v718
        %v730 = vrot.slane %v593, 7
        %v732 = vmul.f32 %v727, %v730
        %734 = vrot.lane.b32.xlu0 %v728, 96
        %v735 = vpop.permute.xlu0 %734
        %v737 = vmul.f32 %v727, %v735
        %739 = vrot.lane.b32.xlu0 %v737, 16
        %v740 = vpop.permute.xlu0 %739
        %v742 = vadd.f32 %v732, %v740
        %v743 = vtanh.pop %v742
        %745 = vrot.lane.b32.xlu0 %v743, 32
        %v746 = vpop.permute.xlu0 %745
        %v748 = vmul.f32 %v727, %v746
        %v749 = vxor.u32 %v721, 2147483648
        %v750 = vmul.f32 %v749, 1.442695
        %v751 = vpow.pop %v750
        %v752 = vadd.f32 %v751, 1.0
        %v753 = vrcp.pop %v752
        %v754 = vmul.f32 1.0, %v753
        %v755 = vtanh.pop %v721
        %v757 = vrot.slane %v617, 1
        %v759 = vmul.f32 %v754, %v757
        %761 = vrot.lane.b32.xlu0 %v755, 96
        %v762 = vpop.permute.xlu0 %761
        %v764 = vmul.f32 %v754, %v762
        %766 = vrot.lane.b32.xlu0 %v764, 16
        %v767 = vpop.permute.xlu0 %766
        %v769 = vadd.f32 %v759, %v767
        %v770 = vtanh.pop %v769
        %772 = vrot.lane.b32.xlu0 %v770, 32
        %v773 = vpop.permute.xlu0 %772
        %v775 = vmul.f32 %v754, %v773
        %777 = vrot.lane.b32.xlu0 %v748, 80
        %v778 = vpop.permute.xlu0 %777
        %vm780 = vcmask 123905
        %781 = vst.msk [vmem:[#allocation2] sm:$0x2] %vm780, %v778
        %783 = vrot.lane.b32.xlu0 %v775, 32
        %v784 = vpop.permute.xlu0 %783
        %vm786 = vcmask 260230
        %787 = vst.msk [vmem:[#allocation2] sm:$0x40] %vm786, %v784
        %v788 = vrot.slane %v775, 5
        %789 = vrot.lane.b32.xlu0 %v788, 32
        %v790 = vpop.permute.xlu0 %789
        %v792 = vsel %vm640, %v778, %v790
        %v794 = vrot.slane %v792, 1
        %v795 = vsel %vm420, %v794, 0
        %797 = vmatprep.subr.mxu0 0.0
        %798 = vmatpush1.msra.mxu0 %v494
        %799 = vmatprep.subr.mxu0 0.0
        %800 = vmatpush1.msra.mxu0 %v495
        %801 = vmatprep.subr.mxu0 0.0
        %802 = vmatpush1.msra.mxu0 %v496
        %803 = vmatprep.subr.mxu0 0.0
        %804 = vmatpush1.msra.mxu0 %v497
        %805 = vmatprep.subr.mxu0 0.0
        %806 = vmatpush1.msra.mxu0 0.0
        %807 = vmatprep.subr.mxu0 0.0
        %808 = vmatpush1.msra.mxu0 0.0
        %809 = vmatprep.subr.mxu0 0.0
        %810 = vmatpush1.msra.mxu0 0.0
        %811 = vmatprep.subr.mxu0 0.0
        %812 = vmatpush1.msra.mxu0 0.0
        %813 = vmatprep.subr.mxu0 0.0
        %814 = vmatpush1.msra.mxu0 0.0
        %815 = vmatprep.subr.mxu0 0.0
        %816 = vmatpush1.msra.mxu0 0.0
        %817 = vmatprep.subr.mxu0 0.0
        %818 = vmatpush1.msra.mxu0 0.0
        %819 = vmatprep.subr.mxu0 0.0
        %820 = vmatpush1.msra.mxu0 0.0
        %821 = vmatprep.subr.mxu0 0.0
        %822 = vmatpush1.msra.mxu0 0.0
        %823 = vmatprep.subr.mxu0 0.0
        %824 = vmatpush1.msra.mxu0 0.0
        %825 = vmatprep.subr.mxu0 0.0
        %826 = vmatpush1.msra.mxu0 0.0
        %827 = vmatprep.subr.mxu0 0.0
        %828 = vmatpush1.msra.mxu0 0.0
        %829 = vmatprep.subr.mxu0 0.0
        %830 = vmatpush1.msra.mxu0 0.0
        %831 = vmatprep.subr.mxu0 0.0
        %832 = vmatpush1.msra.mxu0 0.0
        %833 = vmatprep.subr.mxu0 0.0
        %834 = vmatpush1.msra.mxu0 0.0
        %835 = vmatprep.subr.mxu0 0.0
        %836 = vmatpush1.msra.mxu0 0.0
        %837 = vmatprep.subr.mxu0 0.0
        %838 = vmatpush1.msra.mxu0 0.0
        %839 = vmatprep.subr.mxu0 0.0
        %840 = vmatpush1.msra.mxu0 0.0
        %841 = vmatprep.subr.mxu0 0.0
        %842 = vmatpush1.msra.mxu0 0.0
        %843 = vmatprep.subr.mxu0 0.0
        %844 = vmatpush1.msra.mxu0 0.0
        %845 = vmatprep.subr.mxu0 0.0
        %846 = vmatpush1.msra.mxu0 0.0
        %847 = vmatprep.subr.mxu0 0.0
        %848 = vmatpush1.msra.mxu0 0.0
        %849 = vmatprep.subr.mxu0 0.0
        %850 = vmatpush1.msra.mxu0 0.0
        %851 = vmatprep.subr.mxu0 0.0
        %852 = vmatpush1.msra.mxu0 0.0
        %853 = vmatprep.subr.mxu0 0.0
        %854 = vmatpush1.msra.mxu0 0.0
        %855 = vmatprep.subr.mxu0 0.0
        %856 = vmatpush1.msra.mxu0 0.0
        %857 = vmatprep.subr.mxu0 0.0
        %858 = vmatpush1.msra.mxu0 0.0
        %859 = vmatprep.subr.mxu0 0.0
        %860 = vmatpush1.msra.mxu0 0.0
        %861 = vmatprep.mubr.f32.mxu0 0.0
        %862 = vmatmul.mubr.f32.gmra.mrb[0].mxu0 %v795
        %v863 = vpop.f32.mrb[0].mxu0
        %v864 = vadd.f32 0.0, %v863
        %v865 = vpop.f32.mrb[0].mxu0
        %866 = vdwg.mxu0
        %v868 = vrot.slane %v864, 6
        %v870 = vadd.f32 %v491, %v868
        %v871 = vrot.slane %v864, 3
        %v873 = vadd.f32 %v491, %v871
        %v874 = vxor.u32 %v870, 2147483648
        %v875 = vmul.f32 %v874, 1.442695
        %v876 = vpow.pop %v875
        %v877 = vadd.f32 %v876, 1.0
        %v878 = vrcp.pop %v877
        %v879 = vmul.f32 1.0, %v878
        %v880 = vtanh.pop %v870
        %v882 = vrot.slane %v742, 7
        %v884 = vmul.f32 %v879, %v882
        %886 = vrot.lane.b32.xlu0 %v880, 96
        %v887 = vpop.permute.xlu0 %886
        %v889 = vmul.f32 %v879, %v887
        %891 = vrot.lane.b32.xlu0 %v889, 16
        %v892 = vpop.permute.xlu0 %891
        %v894 = vadd.f32 %v884, %v892
        %v895 = vtanh.pop %v894
        %897 = vrot.lane.b32.xlu0 %v895, 32
        %v898 = vpop.permute.xlu0 %897
        %v900 = vmul.f32 %v879, %v898
        %v901 = vxor.u32 %v873, 2147483648
        %v902 = vmul.f32 %v901, 1.442695
        %v903 = vpow.pop %v902
        %v904 = vadd.f32 %v903, 1.0
        %v905 = vrcp.pop %v904
        %v906 = vmul.f32 1.0, %v905
        %v907 = vtanh.pop %v873
        %v909 = vrot.slane %v769, 1
        %v911 = vmul.f32 %v906, %v909
        %913 = vrot.lane.b32.xlu0 %v907, 96
        %v914 = vpop.permute.xlu0 %913
        %v916 = vmul.f32 %v906, %v914
        %918 = vrot.lane.b32.xlu0 %v916, 16
        %v919 = vpop.permute.xlu0 %918
        %v921 = vadd.f32 %v911, %v919
        %v922 = vtanh.pop %v921
        %924 = vrot.lane.b32.xlu0 %v922, 32
        %v925 = vpop.permute.xlu0 %924
        %v927 = vmul.f32 %v906, %v925
        %929 = vrot.lane.b32.xlu0 %v900, 80
        %v930 = vpop.permute.xlu0 %929
        %vm932 = vcmask 124930
        %933 = vst.msk [vmem:[#allocation2] sm:$0x4] %vm932, %v930
        %935 = vrot.lane.b32.xlu0 %v927, 32
        %v936 = vpop.permute.xlu0 %935
        %vm938 = vcmask 259205
        %939 = vst.msk [vmem:[#allocation2] sm:$0x20] %vm938, %v936
        %v940 = vrot.slane %v927, 3
        %941 = vrot.lane.b32.xlu0 %v940, 32
        %v942 = vpop.permute.xlu0 %941
        %v944 = vsel %vm640, %v930, %v942
        %v946 = vrot.slane %v944, 2
        %v947 = vsel %vm420, %v946, 0
        %949 = vmatprep.subr.mxu0 0.0
        %950 = vmatpush1.msra.mxu0 %v494
        %951 = vmatprep.subr.mxu0 0.0
        %952 = vmatpush1.msra.mxu0 %v495
        %953 = vmatprep.subr.mxu0 0.0
        %954 = vmatpush1.msra.mxu0 %v496
        %955 = vmatprep.subr.mxu0 0.0
        %956 = vmatpush1.msra.mxu0 %v497
        %957 = vmatprep.subr.mxu0 0.0
        %958 = vmatpush1.msra.mxu0 0.0
        %959 = vmatprep.subr.mxu0 0.0
        %960 = vmatpush1.msra.mxu0 0.0
        %961 = vmatprep.subr.mxu0 0.0
        %962 = vmatpush1.msra.mxu0 0.0
        %963 = vmatprep.subr.mxu0 0.0
        %964 = vmatpush1.msra.mxu0 0.0
        %965 = vmatprep.subr.mxu0 0.0
        %966 = vmatpush1.msra.mxu0 0.0
        %967 = vmatprep.subr.mxu0 0.0
        %968 = vmatpush1.msra.mxu0 0.0
        %969 = vmatprep.subr.mxu0 0.0
        %970 = vmatpush1.msra.mxu0 0.0
        %971 = vmatprep.subr.mxu0 0.0
        %972 = vmatpush1.msra.mxu0 0.0
        %973 = vmatprep.subr.mxu0 0.0
        %974 = vmatpush1.msra.mxu0 0.0
        %975 = vmatprep.subr.mxu0 0.0
        %976 = vmatpush1.msra.mxu0 0.0
        %977 = vmatprep.subr.mxu0 0.0
        %978 = vmatpush1.msra.mxu0 0.0
        %979 = vmatprep.subr.mxu0 0.0
        %980 = vmatpush1.msra.mxu0 0.0
        %981 = vmatprep.subr.mxu0 0.0
        %982 = vmatpush1.msra.mxu0 0.0
        %983 = vmatprep.subr.mxu0 0.0
        %984 = vmatpush1.msra.mxu0 0.0
        %985 = vmatprep.subr.mxu0 0.0
        %986 = vmatpush1.msra.mxu0 0.0
        %987 = vmatprep.subr.mxu0 0.0
        %988 = vmatpush1.msra.mxu0 0.0
        %989 = vmatprep.subr.mxu0 0.0
        %990 = vmatpush1.msra.mxu0 0.0
        %991 = vmatprep.subr.mxu0 0.0
        %992 = vmatpush1.msra.mxu0 0.0
        %993 = vmatprep.subr.mxu0 0.0
        %994 = vmatpush1.msra.mxu0 0.0
        %995 = vmatprep.subr.mxu0 0.0
        %996 = vmatpush1.msra.mxu0 0.0
        %997 = vmatprep.subr.mxu0 0.0
        %998 = vmatpush1.msra.mxu0 0.0
        %999 = vmatprep.subr.mxu0 0.0
        %1000 = vmatpush1.msra.mxu0 0.0
        %1001 = vmatprep.subr.mxu0 0.0
        %1002 = vmatpush1.msra.mxu0 0.0
        %1003 = vmatprep.subr.mxu0 0.0
        %1004 = vmatpush1.msra.mxu0 0.0
        %1005 = vmatprep.subr.mxu0 0.0
        %1006 = vmatpush1.msra.mxu0 0.0
        %1007 = vmatprep.subr.mxu0 0.0
        %1008 = vmatpush1.msra.mxu0 0.0
        %1009 = vmatprep.subr.mxu0 0.0
        %1010 = vmatpush1.msra.mxu0 0.0
        %1011 = vmatprep.subr.mxu0 0.0
        %1012 = vmatpush1.msra.mxu0 0.0
        %1013 = vmatprep.mubr.f32.mxu0 0.0
        %1014 = vmatmul.mubr.f32.gmra.mrb[0].mxu0 %v947
        %v1015 = vpop.f32.mrb[0].mxu0
        %v1016 = vadd.f32 0.0, %v1015
        %v1017 = vpop.f32.mrb[0].mxu0
        %1018 = vdwg.mxu0
        %v1020 = vrot.slane %v1016, 5
        %v1022 = vadd.f32 %v491, %v1020
        %v1023 = vrot.slane %v1016, 4
        %v1025 = vadd.f32 %v491, %v1023
        %v1026 = vxor.u32 %v1022, 2147483648
        %v1027 = vmul.f32 %v1026, 1.442695
        %v1028 = vpow.pop %v1027
        %v1029 = vadd.f32 %v1028, 1.0
        %v1030 = vrcp.pop %v1029
        %v1031 = vmul.f32 1.0, %v1030
        %v1032 = vtanh.pop %v1022
        %v1034 = vrot.slane %v894, 7
        %v1036 = vmul.f32 %v1031, %v1034
        %1038 = vrot.lane.b32.xlu0 %v1032, 96
        %v1039 = vpop.permute.xlu0 %1038
        %v1041 = vmul.f32 %v1031, %v1039
        %1043 = vrot.lane.b32.xlu0 %v1041, 16
        %v1044 = vpop.permute.xlu0 %1043
        %v1046 = vadd.f32 %v1036, %v1044
        %v1047 = vtanh.pop %v1046
        %1049 = vrot.lane.b32.xlu0 %v1047, 32
        %v1050 = vpop.permute.xlu0 %1049
        %v1052 = vmul.f32 %v1031, %v1050
        %v1053 = vxor.u32 %v1025, 2147483648
        %v1054 = vmul.f32 %v1053, 1.442695
        %v1055 = vpow.pop %v1054
        %v1056 = vadd.f32 %v1055, 1.0
        %v1057 = vrcp.pop %v1056
        %v1058 = vmul.f32 1.0, %v1057
        %v1059 = vtanh.pop %v1025
        %v1061 = vrot.slane %v921, 1
        %v1063 = vmul.f32 %v1058, %v1061
        %1065 = vrot.lane.b32.xlu0 %v1059, 96
        %v1066 = vpop.permute.xlu0 %1065
        %v1068 = vmul.f32 %v1058, %v1066
        %1070 = vrot.lane.b32.xlu0 %v1068, 16
        %v1071 = vpop.permute.xlu0 %1070
        %v1073 = vadd.f32 %v1063, %v1071
        %v1074 = vtanh.pop %v1073
        %1076 = vrot.lane.b32.xlu0 %v1074, 32
        %v1077 = vpop.permute.xlu0 %1076
        %v1079 = vmul.f32 %v1058, %v1077
        %1081 = vrot.lane.b32.xlu0 %v1052, 80
        %v1082 = vpop.permute.xlu0 %1081
        %vm1084 = vcmask 125955
        %1085 = vst.msk [vmem:[#allocation2] sm:$0x8] %vm1084, %v1082
        %1087 = vrot.lane.b32.xlu0 %v1079, 32
        %v1088 = vpop.permute.xlu0 %1087
        %vm1090 = vcmask 258180
        %1091 = vst.msk [vmem:[#allocation2] sm:$0x10] %vm1090, %v1088
        %v1092 = vrot.slane %v1079, 1
        %1093 = vrot.lane.b32.xlu0 %v1092, 32
        %v1094 = vpop.permute.xlu0 %1093
        %v1096 = vsel %vm640, %v1082, %v1094
        %v1098 = vrot.slane %v1096, 3
        %v1099 = vsel %vm420, %v1098, 0
        %1101 = vmatprep.subr.mxu0 0.0
        %1102 = vmatpush1.msra.mxu0 %v494
        %1103 = vmatprep.subr.mxu0 0.0
        %1104 = vmatpush1.msra.mxu0 %v495
        %1105 = vmatprep.subr.mxu0 0.0
        %1106 = vmatpush1.msra.mxu0 %v496
        %1107 = vmatprep.subr.mxu0 0.0
        %1108 = vmatpush1.msra.mxu0 %v497
        %1109 = vmatprep.subr.mxu0 0.0
        %1110 = vmatpush1.msra.mxu0 0.0
        %1111 = vmatprep.subr.mxu0 0.0
        %1112 = vmatpush1.msra.mxu0 0.0
        %1113 = vmatprep.subr.mxu0 0.0
        %1114 = vmatpush1.msra.mxu0 0.0
        %1115 = vmatprep.subr.mxu0 0.0
        %1116 = vmatpush1.msra.mxu0 0.0
        %1117 = vmatprep.subr.mxu0 0.0
        %1118 = vmatpush1.msra.mxu0 0.0
        %1119 = vmatprep.subr.mxu0 0.0
        %1120 = vmatpush1.msra.mxu0 0.0
        %1121 = vmatprep.subr.mxu0 0.0
        %1122 = vmatpush1.msra.mxu0 0.0
        %1123 = vmatprep.subr.mxu0 0.0
        %1124 = vmatpush1.msra.mxu0 0.0
        %1125 = vmatprep.subr.mxu0 0.0
        %1126 = vmatpush1.msra.mxu0 0.0
        %1127 = vmatprep.subr.mxu0 0.0
        %1128 = vmatpush1.msra.mxu0 0.0
        %1129 = vmatprep.subr.mxu0 0.0
        %1130 = vmatpush1.msra.mxu0 0.0
        %1131 = vmatprep.subr.mxu0 0.0
        %1132 = vmatpush1.msra.mxu0 0.0
        %1133 = vmatprep.subr.mxu0 0.0
        %1134 = vmatpush1.msra.mxu0 0.0
        %1135 = vmatprep.subr.mxu0 0.0
        %1136 = vmatpush1.msra.mxu0 0.0
        %1137 = vmatprep.subr.mxu0 0.0
        %1138 = vmatpush1.msra.mxu0 0.0
        %1139 = vmatprep.subr.mxu0 0.0
        %1140 = vmatpush1.msra.mxu0 0.0
        %1141 = vmatprep.subr.mxu0 0.0
        %1142 = vmatpush1.msra.mxu0 0.0
        %1143 = vmatprep.subr.mxu0 0.0
        %1144 = vmatpush1.msra.mxu0 0.0
        %1145 = vmatprep.subr.mxu0 0.0
        %1146 = vmatpush1.msra.mxu0 0.0
        %1147 = vmatprep.subr.mxu0 0.0
        %1148 = vmatpush1.msra.mxu0 0.0
        %1149 = vmatprep.subr.mxu0 0.0
        %1150 = vmatpush1.msra.mxu0 0.0
        %1151 = vmatprep.subr.mxu0 0.0
        %1152 = vmatpush1.msra.mxu0 0.0
        %1153 = vmatprep.subr.mxu0 0.0
        %1154 = vmatpush1.msra.mxu0 0.0
        %1155 = vmatprep.subr.mxu0 0.0
        %1156 = vmatpush1.msra.mxu0 0.0
        %1157 = vmatprep.subr.mxu0 0.0
        %1158 = vmatpush1.msra.mxu0 0.0
        %1159 = vmatprep.subr.mxu0 0.0
        %1160 = vmatpush1.msra.mxu0 0.0
        %1161 = vmatprep.subr.mxu0 0.0
        %1162 = vmatpush1.msra.mxu0 0.0
        %1163 = vmatprep.subr.mxu0 0.0
        %1164 = vmatpush1.msra.mxu0 0.0
        %1165 = vmatprep.mubr.f32.mxu0 0.0
        %1166 = vmatmul.mubr.f32.gmra.mrb[0].mxu0 %v1099
        %v1167 = vpop.f32.mrb[0].mxu0
        %v1168 = vadd.f32 0.0, %v1167
        %v1169 = vpop.f32.mrb[0].mxu0
        %1170 = vdwg.mxu0
        %v1172 = vrot.slane %v1168, 4
        %v1174 = vadd.f32 %v491, %v1172
        %v1175 = vrot.slane %v1168, 5
        %v1177 = vadd.f32 %v491, %v1175
        %v1178 = vxor.u32 %v1174, 2147483648
        %v1179 = vmul.f32 %v1178, 1.442695
        %v1180 = vpow.pop %v1179
        %v1181 = vadd.f32 %v1180, 1.0
        %v1182 = vrcp.pop %v1181
        %v1183 = vmul.f32 1.0, %v1182
        %v1184 = vtanh.pop %v1174
        %v1186 = vrot.slane %v1046, 7
        %v1188 = vmul.f32 %v1183, %v1186
        %1190 = vrot.lane.b32.xlu0 %v1184, 96
        %v1191 = vpop.permute.xlu0 %1190
        %v1193 = vmul.f32 %v1183, %v1191
        %1195 = vrot.lane.b32.xlu0 %v1193, 16
        %v1196 = vpop.permute.xlu0 %1195
        %v1198 = vadd.f32 %v1188, %v1196
        %v1199 = vtanh.pop %v1198
        %1201 = vrot.lane.b32.xlu0 %v1199, 32
        %v1202 = vpop.permute.xlu0 %1201
        %v1204 = vmul.f32 %v1183, %v1202
        %v1205 = vxor.u32 %v1177, 2147483648
        %v1206 = vmul.f32 %v1205, 1.442695
        %v1207 = vpow.pop %v1206
        %v1208 = vadd.f32 %v1207, 1.0
        %v1209 = vrcp.pop %v1208
        %v1210 = vmul.f32 1.0, %v1209
        %v1211 = vtanh.pop %v1177
        %v1213 = vrot.slane %v1073, 1
        %v1215 = vmul.f32 %v1210, %v1213
        %1217 = vrot.lane.b32.xlu0 %v1211, 96
        %v1218 = vpop.permute.xlu0 %1217
        %v1220 = vmul.f32 %v1210, %v1218
        %1222 = vrot.lane.b32.xlu0 %v1220, 16
        %v1223 = vpop.permute.xlu0 %1222
        %v1225 = vadd.f32 %v1215, %v1223
        %v1226 = vtanh.pop %v1225
        %1228 = vrot.lane.b32.xlu0 %v1226, 32
        %v1229 = vpop.permute.xlu0 %1228
        %v1231 = vmul.f32 %v1210, %v1229
        %1233 = vrot.lane.b32.xlu0 %v1204, 80
        %v1234 = vpop.permute.xlu0 %1233
        %vm1236 = vcmask 126980
        %1237 = vst.msk [vmem:[#allocation2] sm:$0x10] %vm1236, %v1234
        %1239 = vrot.lane.b32.xlu0 %v1231, 32
        %v1240 = vpop.permute.xlu0 %1239
        %vm1242 = vcmask 257155
        %1243 = vst.msk [vmem:[#allocation2] sm:$0x8] %vm1242, %v1240
        %v1244 = vrot.slane %v1231, 7
        %1245 = vrot.lane.b32.xlu0 %v1244, 32
        %v1246 = vpop.permute.xlu0 %1245
        %v1248 = vsel %vm640, %v1234, %v1246
        %v1250 = vrot.slane %v1248, 4
        %v1251 = vsel %vm420, %v1250, 0
        %1253 = vmatprep.subr.mxu0 0.0
        %1254 = vmatpush1.msra.mxu0 %v494
        %1255 = vmatprep.subr.mxu0 0.0
        %1256 = vmatpush1.msra.mxu0 %v495
        %1257 = vmatprep.subr.mxu0 0.0
        %1258 = vmatpush1.msra.mxu0 %v496
        %1259 = vmatprep.subr.mxu0 0.0
        %1260 = vmatpush1.msra.mxu0 %v497
        %1261 = vmatprep.subr.mxu0 0.0
        %1262 = vmatpush1.msra.mxu0 0.0
        %1263 = vmatprep.subr.mxu0 0.0
        %1264 = vmatpush1.msra.mxu0 0.0
        %1265 = vmatprep.subr.mxu0 0.0
        %1266 = vmatpush1.msra.mxu0 0.0
        %1267 = vmatprep.subr.mxu0 0.0
        %1268 = vmatpush1.msra.mxu0 0.0
        %1269 = vmatprep.subr.mxu0 0.0
        %1270 = vmatpush1.msra.mxu0 0.0
        %1271 = vmatprep.subr.mxu0 0.0
        %1272 = vmatpush1.msra.mxu0 0.0
        %1273 = vmatprep.subr.mxu0 0.0
        %1274 = vmatpush1.msra.mxu0 0.0
        %1275 = vmatprep.subr.mxu0 0.0
        %1276 = vmatpush1.msra.mxu0 0.0
        %1277 = vmatprep.subr.mxu0 0.0
        %1278 = vmatpush1.msra.mxu0 0.0
        %1279 = vmatprep.subr.mxu0 0.0
        %1280 = vmatpush1.msra.mxu0 0.0
        %1281 = vmatprep.subr.mxu0 0.0
        %1282 = vmatpush1.msra.mxu0 0.0
        %1283 = vmatprep.subr.mxu0 0.0
        %1284 = vmatpush1.msra.mxu0 0.0
        %1285 = vmatprep.subr.mxu0 0.0
        %1286 = vmatpush1.msra.mxu0 0.0
        %1287 = vmatprep.subr.mxu0 0.0
        %1288 = vmatpush1.msra.mxu0 0.0
        %1289 = vmatprep.subr.mxu0 0.0
        %1290 = vmatpush1.msra.mxu0 0.0
        %1291 = vmatprep.subr.mxu0 0.0
        %1292 = vmatpush1.msra.mxu0 0.0
        %1293 = vmatprep.subr.mxu0 0.0
        %1294 = vmatpush1.msra.mxu0 0.0
        %1295 = vmatprep.subr.mxu0 0.0
        %1296 = vmatpush1.msra.mxu0 0.0
        %1297 = vmatprep.subr.mxu0 0.0
        %1298 = vmatpush1.msra.mxu0 0.0
        %1299 = vmatprep.subr.mxu0 0.0
        %1300 = vmatpush1.msra.mxu0 0.0
        %1301 = vmatprep.subr.mxu0 0.0
        %1302 = vmatpush1.msra.mxu0 0.0
        %1303 = vmatprep.subr.mxu0 0.0
        %1304 = vmatpush1.msra.mxu0 0.0
        %1305 = vmatprep.subr.mxu0 0.0
        %1306 = vmatpush1.msra.mxu0 0.0
        %1307 = vmatprep.subr.mxu0 0.0
        %1308 = vmatpush1.msra.mxu0 0.0
        %1309 = vmatprep.subr.mxu0 0.0
        %1310 = vmatpush1.msra.mxu0 0.0
        %1311 = vmatprep.subr.mxu0 0.0
        %1312 = vmatpush1.msra.mxu0 0.0
        %1313 = vmatprep.subr.mxu0 0.0
        %1314 = vmatpush1.msra.mxu0 0.0
        %1315 = vmatprep.subr.mxu0 0.0
        %1316 = vmatpush1.msra.mxu0 0.0
        %1317 = vmatprep.mubr.f32.mxu0 0.0
        %1318 = vmatmul.mubr.f32.gmra.mrb[0].mxu0 %v1251
        %v1319 = vpop.f32.mrb[0].mxu0
        %v1320 = vadd.f32 0.0, %v1319
        %v1321 = vpop.f32.mrb[0].mxu0
        %1322 = vdwg.mxu0
        %v1324 = vrot.slane %v1320, 3
        %v1326 = vadd.f32 %v491, %v1324
        %v1327 = vrot.slane %v1320, 6
        %v1329 = vadd.f32 %v491, %v1327
        %v1330 = vxor.u32 %v1326, 2147483648
        %v1331 = vmul.f32 %v1330, 1.442695
        %v1332 = vpow.pop %v1331
        %v1333 = vadd.f32 %v1332, 1.0
        %v1334 = vrcp.pop %v1333
        %v1335 = vmul.f32 1.0, %v1334
        %v1336 = vtanh.pop %v1326
        %v1338 = vrot.slane %v1198, 7
        %v1340 = vmul.f32 %v1335, %v1338
        %1342 = vrot.lane.b32.xlu0 %v1336, 96
        %v1343 = vpop.permute.xlu0 %1342
        %v1345 = vmul.f32 %v1335, %v1343
        %1347 = vrot.lane.b32.xlu0 %v1345, 16
        %v1348 = vpop.permute.xlu0 %1347
        %v1350 = vadd.f32 %v1340, %v1348
        %v1351 = vtanh.pop %v1350
        %1353 = vrot.lane.b32.xlu0 %v1351, 32
        %v1354 = vpop.permute.xlu0 %1353
        %v1356 = vmul.f32 %v1335, %v1354
        %v1357 = vxor.u32 %v1329, 2147483648
        %v1358 = vmul.f32 %v1357, 1.442695
        %v1359 = vpow.pop %v1358
        %v1360 = vadd.f32 %v1359, 1.0
        %v1361 = vrcp.pop %v1360
        %v1362 = vmul.f32 1.0, %v1361
        %v1363 = vtanh.pop %v1329
        %v1365 = vrot.slane %v1225, 1
        %v1367 = vmul.f32 %v1362, %v1365
        %1369 = vrot.lane.b32.xlu0 %v1363, 96
        %v1370 = vpop.permute.xlu0 %1369
        %v1372 = vmul.f32 %v1362, %v1370
        %1374 = vrot.lane.b32.xlu0 %v1372, 16
        %v1375 = vpop.permute.xlu0 %1374
        %v1377 = vadd.f32 %v1367, %v1375
        %v1378 = vtanh.pop %v1377
        %1380 = vrot.lane.b32.xlu0 %v1378, 32
        %v1381 = vpop.permute.xlu0 %1380
        %v1383 = vmul.f32 %v1362, %v1381
        %1385 = vrot.lane.b32.xlu0 %v1356, 80
        %v1386 = vpop.permute.xlu0 %1385
        %vm1388 = vcmask 128005
        %1389 = vst.msk [vmem:[#allocation2] sm:$0x20] %vm1388, %v1386
        %1391 = vrot.lane.b32.xlu0 %v1383, 32
        %v1392 = vpop.permute.xlu0 %1391
        %vm1394 = vcmask 256130
        %1395 = vst.msk [vmem:[#allocation2] sm:$0x4] %vm1394, %v1392
        %v1396 = vrot.slane %v1383, 5
        %1397 = vrot.lane.b32.xlu0 %v1396, 32
        %v1398 = vpop.permute.xlu0 %1397
        %v1400 = vsel %vm640, %v1386, %v1398
        %v1402 = vrot.slane %v1400, 5
        %v1403 = vsel %vm420, %v1402, 0
        %1405 = vmatprep.subr.mxu0 0.0
        %1406 = vmatpush1.msra.mxu0 %v494
        %1407 = vmatprep.subr.mxu0 0.0
        %1408 = vmatpush1.msra.mxu0 %v495
        %1409 = vmatprep.subr.mxu0 0.0
        %1410 = vmatpush1.msra.mxu0 %v496
        %1411 = vmatprep.subr.mxu0 0.0
        %1412 = vmatpush1.msra.mxu0 %v497
        %1413 = vmatprep.subr.mxu0 0.0
        %1414 = vmatpush1.msra.mxu0 0.0
        %1415 = vmatprep.subr.mxu0 0.0
        %1416 = vmatpush1.msra.mxu0 0.0
        %1417 = vmatprep.subr.mxu0 0.0
        %1418 = vmatpush1.msra.mxu0 0.0
        %1419 = vmatprep.subr.mxu0 0.0
        %1420 = vmatpush1.msra.mxu0 0.0
        %1421 = vmatprep.subr.mxu0 0.0
        %1422 = vmatpush1.msra.mxu0 0.0
        %1423 = vmatprep.subr.mxu0 0.0
        %1424 = vmatpush1.msra.mxu0 0.0
        %1425 = vmatprep.subr.mxu0 0.0
        %1426 = vmatpush1.msra.mxu0 0.0
        %1427 = vmatprep.subr.mxu0 0.0
        %1428 = vmatpush1.msra.mxu0 0.0
        %1429 = vmatprep.subr.mxu0 0.0
        %1430 = vmatpush1.msra.mxu0 0.0
        %1431 = vmatprep.subr.mxu0 0.0
        %1432 = vmatpush1.msra.mxu0 0.0
        %1433 = vmatprep.subr.mxu0 0.0
        %1434 = vmatpush1.msra.mxu0 0.0
        %1435 = vmatprep.subr.mxu0 0.0
        %1436 = vmatpush1.msra.mxu0 0.0
        %1437 = vmatprep.subr.mxu0 0.0
        %1438 = vmatpush1.msra.mxu0 0.0
        %1439 = vmatprep.subr.mxu0 0.0
        %1440 = vmatpush1.msra.mxu0 0.0
        %1441 = vmatprep.subr.mxu0 0.0
        %1442 = vmatpush1.msra.mxu0 0.0
        %1443 = vmatprep.subr.mxu0 0.0
        %1444 = vmatpush1.msra.mxu0 0.0
        %1445 = vmatprep.subr.mxu0 0.0
        %1446 = vmatpush1.msra.mxu0 0.0
        %1447 = vmatprep.subr.mxu0 0.0
        %1448 = vmatpush1.msra.mxu0 0.0
        %1449 = vmatprep.subr.mxu0 0.0
        %1450 = vmatpush1.msra.mxu0 0.0
        %1451 = vmatprep.subr.mxu0 0.0
        %1452 = vmatpush1.msra.mxu0 0.0
        %1453 = vmatprep.subr.mxu0 0.0
        %1454 = vmatpush1.msra.mxu0 0.0
        %1455 = vmatprep.subr.mxu0 0.0
        %1456 = vmatpush1.msra.mxu0 0.0
        %1457 = vmatprep.subr.mxu0 0.0
        %1458 = vmatpush1.msra.mxu0 0.0
        %1459 = vmatprep.subr.mxu0 0.0
        %1460 = vmatpush1.msra.mxu0 0.0
        %1461 = vmatprep.subr.mxu0 0.0
        %1462 = vmatpush1.msra.mxu0 0.0
        %1463 = vmatprep.subr.mxu0 0.0
        %1464 = vmatpush1.msra.mxu0 0.0
        %1465 = vmatprep.subr.mxu0 0.0
        %1466 = vmatpush1.msra.mxu0 0.0
        %1467 = vmatprep.subr.mxu0 0.0
        %1468 = vmatpush1.msra.mxu0 0.0
        %1469 = vmatprep.mubr.f32.mxu0 0.0
        %1470 = vmatmul.mubr.f32.gmra.mrb[0].mxu0 %v1403
        %v1471 = vpop.f32.mrb[0].mxu0
        %v1472 = vadd.f32 0.0, %v1471
        %v1473 = vpop.f32.mrb[0].mxu0
        %1474 = vdwg.mxu0
        %v1476 = vrot.slane %v1472, 2
        %v1478 = vadd.f32 %v491, %v1476
        %v1479 = vrot.slane %v1472, 7
        %v1481 = vadd.f32 %v491, %v1479
        %v1482 = vxor.u32 %v1478, 2147483648
        %v1483 = vmul.f32 %v1482, 1.442695
        %v1484 = vpow.pop %v1483
        %v1485 = vadd.f32 %v1484, 1.0
        %v1486 = vrcp.pop %v1485
        %v1487 = vmul.f32 1.0, %v1486
        %v1488 = vtanh.pop %v1478
        %v1490 = vrot.slane %v1350, 7
        %v1492 = vmul.f32 %v1487, %v1490
        %1494 = vrot.lane.b32.xlu0 %v1488, 96
        %v1495 = vpop.permute.xlu0 %1494
        %v1497 = vmul.f32 %v1487, %v1495
        %1499 = vrot.lane.b32.xlu0 %v1497, 16
        %v1500 = vpop.permute.xlu0 %1499
        %v1502 = vadd.f32 %v1492, %v1500
        %v1503 = vtanh.pop %v1502
        %1505 = vrot.lane.b32.xlu0 %v1503, 32
        %v1506 = vpop.permute.xlu0 %1505
        %v1508 = vmul.f32 %v1487, %v1506
        %v1509 = vxor.u32 %v1481, 2147483648
        %v1510 = vmul.f32 %v1509, 1.442695
        %v1511 = vpow.pop %v1510
        %v1512 = vadd.f32 %v1511, 1.0
        %v1513 = vrcp.pop %v1512
        %v1514 = vmul.f32 1.0, %v1513
        %v1515 = vtanh.pop %v1481
        %v1517 = vrot.slane %v1377, 1
        %v1519 = vmul.f32 %v1514, %v1517
        %1521 = vrot.lane.b32.xlu0 %v1515, 96
        %v1522 = vpop.permute.xlu0 %1521
        %v1524 = vmul.f32 %v1514, %v1522
        %1526 = vrot.lane.b32.xlu0 %v1524, 16
        %v1527 = vpop.permute.xlu0 %1526
        %v1529 = vadd.f32 %v1519, %v1527
        %v1530 = vtanh.pop %v1529
        %1532 = vrot.lane.b32.xlu0 %v1530, 32
        %v1533 = vpop.permute.xlu0 %1532
        %v1535 = vmul.f32 %v1514, %v1533
        %1537 = vrot.lane.b32.xlu0 %v1508, 80
        %v1538 = vpop.permute.xlu0 %1537
        %vm1540 = vcmask 129030
        %1541 = vst.msk [vmem:[#allocation2] sm:$0x40] %vm1540, %v1538
        %1543 = vrot.lane.b32.xlu0 %v1535, 32
        %v1544 = vpop.permute.xlu0 %1543
        %vm1546 = vcmask 255105
        %1547 = vst.msk [vmem:[#allocation2] sm:$0x2] %vm1546, %v1544
        %v1548 = vrot.slane %v1535, 3
        %1549 = vrot.lane.b32.xlu0 %v1548, 32
        %v1550 = vpop.permute.xlu0 %1549
        %v1552 = vsel %vm640, %v1538, %v1550
        %v1554 = vrot.slane %v1552, 6
        %v1555 = vsel %vm420, %v1554, 0
        %1557 = vmatprep.subr.mxu0 0.0
        %1558 = vmatpush1.msra.mxu0 %v494
        %1559 = vmatprep.subr.mxu0 0.0
        %1560 = vmatpush1.msra.mxu0 %v495
        %1561 = vmatprep.subr.mxu0 0.0
        %1562 = vmatpush1.msra.mxu0 %v496
        %1563 = vmatprep.subr.mxu0 0.0
        %1564 = vmatpush1.msra.mxu0 %v497
        %1565 = vmatprep.subr.mxu0 0.0
        %1566 = vmatpush1.msra.mxu0 0.0
        %1567 = vmatprep.subr.mxu0 0.0
        %1568 = vmatpush1.msra.mxu0 0.0
        %1569 = vmatprep.subr.mxu0 0.0
        %1570 = vmatpush1.msra.mxu0 0.0
        %1571 = vmatprep.subr.mxu0 0.0
        %1572 = vmatpush1.msra.mxu0 0.0
        %1573 = vmatprep.subr.mxu0 0.0
        %1574 = vmatpush1.msra.mxu0 0.0
        %1575 = vmatprep.subr.mxu0 0.0
        %1576 = vmatpush1.msra.mxu0 0.0
        %1577 = vmatprep.subr.mxu0 0.0
        %1578 = vmatpush1.msra.mxu0 0.0
        %1579 = vmatprep.subr.mxu0 0.0
        %1580 = vmatpush1.msra.mxu0 0.0
        %1581 = vmatprep.subr.mxu0 0.0
        %1582 = vmatpush1.msra.mxu0 0.0
        %1583 = vmatprep.subr.mxu0 0.0
        %1584 = vmatpush1.msra.mxu0 0.0
        %1585 = vmatprep.subr.mxu0 0.0
        %1586 = vmatpush1.msra.mxu0 0.0
        %1587 = vmatprep.subr.mxu0 0.0
        %1588 = vmatpush1.msra.mxu0 0.0
        %1589 = vmatprep.subr.mxu0 0.0
        %1590 = vmatpush1.msra.mxu0 0.0
        %1591 = vmatprep.subr.mxu0 0.0
        %1592 = vmatpush1.msra.mxu0 0.0
        %1593 = vmatprep.subr.mxu0 0.0
        %1594 = vmatpush1.msra.mxu0 0.0
        %1595 = vmatprep.subr.mxu0 0.0
        %1596 = vmatpush1.msra.mxu0 0.0
        %1597 = vmatprep.subr.mxu0 0.0
        %1598 = vmatpush1.msra.mxu0 0.0
        %1599 = vmatprep.subr.mxu0 0.0
        %1600 = vmatpush1.msra.mxu0 0.0
        %1601 = vmatprep.subr.mxu0 0.0
        %1602 = vmatpush1.msra.mxu0 0.0
        %1603 = vmatprep.subr.mxu0 0.0
        %1604 = vmatpush1.msra.mxu0 0.0
        %1605 = vmatprep.subr.mxu0 0.0
        %1606 = vmatpush1.msra.mxu0 0.0
        %1607 = vmatprep.subr.mxu0 0.0
        %1608 = vmatpush1.msra.mxu0 0.0
        %1609 = vmatprep.subr.mxu0 0.0
        %1610 = vmatpush1.msra.mxu0 0.0
        %1611 = vmatprep.subr.mxu0 0.0
        %1612 = vmatpush1.msra.mxu0 0.0
        %1613 = vmatprep.subr.mxu0 0.0
        %1614 = vmatpush1.msra.mxu0 0.0
        %1615 = vmatprep.subr.mxu0 0.0
        %1616 = vmatpush1.msra.mxu0 0.0
        %1617 = vmatprep.subr.mxu0 0.0
        %1618 = vmatpush1.msra.mxu0 0.0
        %1619 = vmatprep.subr.mxu0 0.0
        %1620 = vmatpush1.msra.mxu0 0.0
        %1621 = vmatprep.mubr.f32.mxu0 0.0
        %1622 = vmatmul.mubr.f32.gmra.mrb[0].mxu0 %v1555
        %v1623 = vpop.f32.mrb[0].mxu0
        %v1624 = vadd.f32 0.0, %v1623
        %v1625 = vpop.f32.mrb[0].mxu0
        %1626 = vdwg.mxu0
        %v1628 = vrot.slane %v1624, 1
        %v1630 = vadd.f32 %v491, %v1628
        %v1631 = vadd.f32 %v491, %v1624
        %v1632 = vxor.u32 %v1630, 2147483648
        %v1633 = vmul.f32 %v1632, 1.442695
        %v1634 = vpow.pop %v1633
        %v1635 = vadd.f32 %v1634, 1.0
        %v1636 = vrcp.pop %v1635
        %v1637 = vmul.f32 1.0, %v1636
        %v1638 = vtanh.pop %v1630
        %v1640 = vrot.slane %v1502, 7
        %v1642 = vmul.f32 %v1637, %v1640
        %1644 = vrot.lane.b32.xlu0 %v1638, 96
        %v1645 = vpop.permute.xlu0 %1644
        %v1647 = vmul.f32 %v1637, %v1645
        %1649 = vrot.lane.b32.xlu0 %v1647, 16
        %v1650 = vpop.permute.xlu0 %1649
        %v1652 = vadd.f32 %v1642, %v1650
        %v1653 = vtanh.pop %v1652
        %1655 = vrot.lane.b32.xlu0 %v1653, 32
        %v1656 = vpop.permute.xlu0 %1655
        %v1658 = vmul.f32 %v1637, %v1656
        %v1659 = vxor.u32 %v1631, 2147483648
        %v1660 = vmul.f32 %v1659, 1.442695
        %v1661 = vpow.pop %v1660
        %v1662 = vadd.f32 %v1661, 1.0
        %v1663 = vrcp.pop %v1662
        %v1664 = vmul.f32 1.0, %v1663
        %v1665 = vtanh.pop %v1631
        %v1667 = vrot.slane %v1529, 1
        %v1669 = vmul.f32 %v1664, %v1667
        %1671 = vrot.lane.b32.xlu0 %v1665, 96
        %v1672 = vpop.permute.xlu0 %1671
        %v1674 = vmul.f32 %v1664, %v1672
        %1676 = vrot.lane.b32.xlu0 %v1674, 16
        %v1677 = vpop.permute.xlu0 %1676
        %v1679 = vadd.f32 %v1669, %v1677
        %v1680 = vtanh.pop %v1679
        %1682 = vrot.lane.b32.xlu0 %v1680, 32
        %v1683 = vpop.permute.xlu0 %1682
        %v1685 = vmul.f32 %v1664, %v1683
        %1687 = vrot.lane.b32.xlu0 %v1658, 80
        %v1688 = vpop.permute.xlu0 %1687
        %vm1690 = vcmask 130055
        %1691 = vst.msk [vmem:[#allocation2] sm:$0x80] %vm1690, %v1688
        %1693 = vrot.lane.b32.xlu0 %v1685, 32
        %v1694 = vpop.permute.xlu0 %1693
        %vm1696 = vcmask 254080
        %1697 = vst.msk [vmem:[#allocation2] sm:$0x1] %vm1696, %v1694
        %v1698 = vld [vmem:[#allocation2] sm:$0xff]
        %v1699 = vld [vmem:[#allocation7] sm:$0xff]
        %v1700 = vld [vmem:[#allocation7 + $0x8] sm:$0xff]
        %v1701 = vld [vmem:[#allocation7 + $0x10] sm:$0xff]
        %v1702 = vld [vmem:[#allocation7 + $0x18] sm:$0xff]
        %v1703 = vld [vmem:[%s5] sm:$0x1]
        %v1705 = vlaneseq
        %v1706 = vshrl.u32 %v1705, 7
        %v1707 = vsub.s32 0, %v1706
        %v1708 = vrot.slane %v1703, %v1707
        %v1711 = vsel %vm420, %v1698, 0
        %1713 = vmatprep.subr.mxu0 0.0
        %1714 = vmatpush1.msra.mxu0 %v1699
        %1715 = vmatprep.subr.mxu0 0.0
        %1716 = vmatpush1.msra.mxu0 %v1700
        %1717 = vmatprep.subr.mxu0 0.0
        %1718 = vmatpush1.msra.mxu0 %v1701
        %1719 = vmatprep.subr.mxu0 0.0
        %1720 = vmatpush1.msra.mxu0 %v1702
        %1721 = vmatprep.subr.mxu0 0.0
        %1722 = vmatpush1.msra.mxu0 0.0
        %1723 = vmatprep.subr.mxu0 0.0
        %1724 = vmatpush1.msra.mxu0 0.0
        %1725 = vmatprep.subr.mxu0 0.0
        %1726 = vmatpush1.msra.mxu0 0.0
        %1727 = vmatprep.subr.mxu0 0.0
        %1728 = vmatpush1.msra.mxu0 0.0
        %1729 = vmatprep.subr.mxu0 0.0
        %1730 = vmatpush1.msra.mxu0 0.0
        %1731 = vmatprep.subr.mxu0 0.0
        %1732 = vmatpush1.msra.mxu0 0.0
        %1733 = vmatprep.subr.mxu0 0.0
        %1734 = vmatpush1.msra.mxu0 0.0
        %1735 = vmatprep.subr.mxu0 0.0
        %1736 = vmatpush1.msra.mxu0 0.0
        %1737 = vmatprep.subr.mxu0 0.0
        %1738 = vmatpush1.msra.mxu0 0.0
        %1739 = vmatprep.subr.mxu0 0.0
        %1740 = vmatpush1.msra.mxu0 0.0
        %1741 = vmatprep.subr.mxu0 0.0
        %1742 = vmatpush1.msra.mxu0 0.0
        %1743 = vmatprep.subr.mxu0 0.0
        %1744 = vmatpush1.msra.mxu0 0.0
        %1745 = vmatprep.subr.mxu0 0.0
        %1746 = vmatpush1.msra.mxu0 0.0
        %1747 = vmatprep.subr.mxu0 0.0
        %1748 = vmatpush1.msra.mxu0 0.0
        %1749 = vmatprep.subr.mxu0 0.0
        %1750 = vmatpush1.msra.mxu0 0.0
        %1751 = vmatprep.subr.mxu0 0.0
        %1752 = vmatpush1.msra.mxu0 0.0
        %1753 = vmatprep.subr.mxu0 0.0
        %1754 = vmatpush1.msra.mxu0 0.0
        %1755 = vmatprep.subr.mxu0 0.0
        %1756 = vmatpush1.msra.mxu0 0.0
        %1757 = vmatprep.subr.mxu0 0.0
        %1758 = vmatpush1.msra.mxu0 0.0
        %1759 = vmatprep.subr.mxu0 0.0
        %1760 = vmatpush1.msra.mxu0 0.0
        %1761 = vmatprep.subr.mxu0 0.0
        %1762 = vmatpush1.msra.mxu0 0.0
        %1763 = vmatprep.subr.mxu0 0.0
        %1764 = vmatpush1.msra.mxu0 0.0
        %1765 = vmatprep.subr.mxu0 0.0
        %1766 = vmatpush1.msra.mxu0 0.0
        %1767 = vmatprep.subr.mxu0 0.0
        %1768 = vmatpush1.msra.mxu0 0.0
        %1769 = vmatprep.subr.mxu0 0.0
        %1770 = vmatpush1.msra.mxu0 0.0
        %1771 = vmatprep.subr.mxu0 0.0
        %1772 = vmatpush1.msra.mxu0 0.0
        %1773 = vmatprep.subr.mxu0 0.0
        %1774 = vmatpush1.msra.mxu0 0.0
        %1775 = vmatprep.subr.mxu0 0.0
        %1776 = vmatpush1.msra.mxu0 0.0
        %1777 = vmatprep.mubr.f32.mxu0 0.0
        %1778 = vmatmul.mubr.f32.gmra.mrb[0].mxu0 %v1711
        %v1779 = vpop.f32.mrb[0].mxu0
        %v1780 = vadd.f32 %v1708, %v1779
        %v1781 = vpop.f32.mrb[0].mxu0
        %1782 = vdwg.mxu0
        %v1783 = vtanh.pop %v1780
        %v1784 = vld [vmem:[%s6] sm:$0x1]
        %v1786 = vlaneseq
        %v1787 = vshrl.u32 %v1786, 7
        %v1788 = vsub.s32 0, %v1787
        %v1789 = vrot.slane %v1784, %v1788
        %v1791 = vmul.f32 %v1783, %v1789
        %v1792 = vsel %vm420, %v1791, 0.0
        %1793 = vadd.xlane.f32.xlu0 %v1792
        %v1794 = vpop.xlane.xlu0 %1793
        %v1795 = vrot.slane %v1794, 4
        %v1796 = vmax.f32 %v1794, %v1795
        %v1797 = vrot.slane %v1796, 2
        %v1798 = vmax.f32 %v1796, %v1797
        %v1799 = vrot.slane %v1798, 1
        %v1800 = vmax.f32 %v1798, %v1799
        %v1801 = vsub.f32 %v1794, %v1800
        %v1802 = vmul.f32 %v1801, 1.442695
        %v1803 = vpow.pop %v1802
        %v1804 = vrot.slane %v1803, 4
        %v1805 = vadd.f32 %v1803, %v1804
        %v1806 = vrot.slane %v1805, 2
        %v1807 = vadd.f32 %v1805, %v1806
        %v1808 = vrot.slane %v1807, 1
        %v1809 = vadd.f32 %v1807, %v1808
        %v1810 = vrcp.pop %v1809
        %v1811 = vmul.f32 %v1803, %v1810
        %vm1812 = vcmask 7168
        %1813 = vst.msk [vmem:[%s407] sm:$0xff] %vm1812, %v1811
        %v1814 = vmul.f32 %v1698, %v1811
        %v1815 = vsel %vm420, %v1814, 0.0
        %v1816 = vrot.slane %v1815, 4
        %v1817 = vadd.f32 %v1815, %v1816
        %v1818 = vrot.slane %v1817, 2
        %v1819 = vadd.f32 %v1817, %v1818
        %v1820 = vrot.slane %v1819, 1
        %v1821 = vadd.f32 %v1819, %v1820
        %v1822 = vld [vmem:[%s7] sm:$0xff]
        %v1823 = vld [vmem:[%s7 + $0x8] sm:$0xff]
        %v1824 = vld [vmem:[%s7 + $0x10] sm:$0xff]
        %v1825 = vld [vmem:[%s7 + $0x18] sm:$0xff]
        %v1826 = vld [vmem:[%s8] sm:$0x1]
        %v1828 = vsel %vm420, %v1821, 0
        %1830 = vmatprep.subr.mxu0 0.0
        %1831 = vmatpush1.msra.mxu0 %v1822
        %1832 = vmatprep.subr.mxu0 0.0
        %1833 = vmatpush1.msra.mxu0 %v1823
        %1834 = vmatprep.subr.mxu0 0.0
        %1835 = vmatpush1.msra.mxu0 %v1824
        %1836 = vmatprep.subr.mxu0 0.0
        %1837 = vmatpush1.msra.mxu0 %v1825
        %1838 = vmatprep.subr.mxu0 0.0
        %1839 = vmatpush1.msra.mxu0 0.0
        %1840 = vmatprep.subr.mxu0 0.0
        %1841 = vmatpush1.msra.mxu0 0.0
        %1842 = vmatprep.subr.mxu0 0.0
        %1843 = vmatpush1.msra.mxu0 0.0
        %1844 = vmatprep.subr.mxu0 0.0
        %1845 = vmatpush1.msra.mxu0 0.0
        %1846 = vmatprep.subr.mxu0 0.0
        %1847 = vmatpush1.msra.mxu0 0.0
        %1848 = vmatprep.subr.mxu0 0.0
        %1849 = vmatpush1.msra.mxu0 0.0
        %1850 = vmatprep.subr.mxu0 0.0
        %1851 = vmatpush1.msra.mxu0 0.0
        %1852 = vmatprep.subr.mxu0 0.0
        %1853 = vmatpush1.msra.mxu0 0.0
        %1854 = vmatprep.subr.mxu0 0.0
        %1855 = vmatpush1.msra.mxu0 0.0
        %1856 = vmatprep.subr.mxu0 0.0
        %1857 = vmatpush1.msra.mxu0 0.0
        %1858 = vmatprep.subr.mxu0 0.0
        %1859 = vmatpush1.msra.mxu0 0.0
        %1860 = vmatprep.subr.mxu0 0.0
        %1861 = vmatpush1.msra.mxu0 0.0
        %1862 = vmatprep.subr.mxu0 0.0
        %1863 = vmatpush1.msra.mxu0 0.0
        %1864 = vmatprep.subr.mxu0 0.0
        %1865 = vmatpush1.msra.mxu0 0.0
        %1866 = vmatprep.subr.mxu0 0.0
        %1867 = vmatpush1.msra.mxu0 0.0
        %1868 = vmatprep.subr.mxu0 0.0
        %1869 = vmatpush1.msra.mxu0 0.0
        %1870 = vmatprep.subr.mxu0 0.0
        %1871 = vmatpush1.msra.mxu0 0.0
        %1872 = vmatprep.subr.mxu0 0.0
        %1873 = vmatpush1.msra.mxu0 0.0
        %1874 = vmatprep.subr.mxu0 0.0
        %1875 = vmatpush1.msra.mxu0 0.0
        %1876 = vmatprep.subr.mxu0 0.0
        %1877 = vmatpush1.msra.mxu0 0.0
        %1878 = vmatprep.subr.mxu0 0.0
        %1879 = vmatpush1.msra.mxu0 0.0
        %1880 = vmatprep.subr.mxu0 0.0
        %1881 = vmatpush1.msra.mxu0 0.0
        %1882 = vmatprep.subr.mxu0 0.0
        %1883 = vmatpush1.msra.mxu0 0.0
        %1884 = vmatprep.subr.mxu0 0.0
        %1885 = vmatpush1.msra.mxu0 0.0
        %1886 = vmatprep.subr.mxu0 0.0
        %1887 = vmatpush1.msra.mxu0 0.0
        %1888 = vmatprep.subr.mxu0 0.0
        %1889 = vmatpush1.msra.mxu0 0.0
        %1890 = vmatprep.subr.mxu0 0.0
        %1891 = vmatpush1.msra.mxu0 0.0
        %1892 = vmatprep.subr.mxu0 0.0
        %1893 = vmatpush1.msra.mxu0 0.0
        %1894 = vmatprep.mubr.f32.mxu0 0.0
        %1895 = vmatmul.mubr.f32.gmra.mrb[0].mxu0 %v1828
        %v1896 = vpop.f32.mrb[0].mxu0
        %v1897 = vadd.f32 %v1826, %v1896
        %v1898 = vpop.f32.mrb[0].mxu0
        %1899 = vdwg.mxu0
        %vm1900 = vcmask 8192
        %1901 = vst.msk [vmem:[%s403] sm:$0x1] %vm1900, %v1897
        %p1902 = scmp.lt.s32.totalorder %s24, 3
        %s1903 = scalar_select %p1902, %s24, 3
        %s1904 = scalar_lea.vmem %s9, %s1903
        %p1905 = scmp.lt.s32.totalorder %s24, 3
        %s1906 = scalar_select %p1905, %s24, 3
        %s1907 = smul.addr %s1906, 8
        %s1908 = scalar_lea.vmem %s10, %s1907
        // Predicated region
        $region69: #{tpu_custom_call.1} parent=55 // pred_check
          %p1909 = pneg %p236
        $region70: #{tpu_custom_call.1} parent=55 // pred_check_branch
          %1911 = sbr.rel (%p1909) target = $region72
        $region71: #{tpu_custom_call.1} parent=55 // pred_region
          _
        $region72: #{tpu_custom_call.1} parent=55 // pred_fallthru
          _
        // Predicated region
        $region73: #{tpu_custom_call.1} parent=55 // pred_check
          %p1912 = pneg %p262
        $region74: #{tpu_custom_call.1} parent=55 // pred_check_branch
          %1914 = sbr.rel (%p1912) target = $region76
        $region75: #{tpu_custom_call.1} parent=55 // pred_region
          _
        $region76: #{tpu_custom_call.1} parent=55 // pred_fallthru
          _
      $region56: #{tpu_custom_call.1} parent=5 // pred_fallthru
        _
      %p1915 = scmp.le.s32.totalorder 2, %s19
      // Predicated region
      $region77: #{tpu_custom_call.1} parent=5 // pred_check
        %p1916 = pneg %p1915
      $region78: #{tpu_custom_call.1} parent=5 // pred_check_branch
        %1918 = sbr.rel (%p1916) target = $region80
      $region79: #{tpu_custom_call.1} parent=5 // pred_region
        %s1919 = ssub.s32 %s19, 2
        // Predicated region
        $region81: #{tpu_custom_call.1} parent=79 // pred_check
          %p1920 = pneg %p242
        $region82: #{tpu_custom_call.1} parent=79 // pred_check_branch
          %1922 = sbr.rel (%p1920) target = $region84
        $region83: #{tpu_custom_call.1} parent=79 // pred_region
          %p1923 = scmp.lt.s32.totalorder %s25, 3
          %s1924 = scalar_select %p1923, %s25, 3
          %s1925 = scalar_lea.vmem %s9, %s1924
        $region84: #{tpu_custom_call.1} parent=79 // pred_fallthru
          _
        // Predicated region
        $region85: #{tpu_custom_call.1} parent=79 // pred_check
          %p1926 = pneg %p268
        $region86: #{tpu_custom_call.1} parent=79 // pred_check_branch
          %1928 = sbr.rel (%p1926) target = $region88
        $region87: #{tpu_custom_call.1} parent=79 // pred_region
          %p1929 = scmp.lt.s32.totalorder %s25, 3
          %s1930 = scalar_select %p1929, %s25, 3
          %s1931 = smul.addr %s1930, 8
          %s1932 = scalar_lea.vmem %s10, %s1931
        $region88: #{tpu_custom_call.1} parent=79 // pred_fallthru
          _
      $region80: #{tpu_custom_call.1} parent=5 // pred_fallthru
        _
    $region6: #{tpu_custom_call.1} parent=1 // loop_footer
      %s23 = sadd.s32 1, %s19
    $region7: #{tpu_custom_call.1} parent=1 // loop_footer_branch
      %18 = sbr.rel target = $region3
    $region8: #{tpu_custom_call.1} parent=1 // loop_exit
      _
    %1933 = vsyncpa [#allocation4], 1
    %s1934 = scalar_lea.sflag [#allocation4], 1
    %1935 = vsyncpa %s1934, 1
    %1936 = vsyncpa [#allocation6], 1

</llo_original>
